<compile_context>
chip_gen: v7x
topology: tpu7x:2x2x1
jax: 0.10.0
libtpu: 0.0.40
codegen_flags: <defaults>
</compile_context>

<pallas_src>
import functools

import jax
import jax.numpy as jnp
from jax import lax
from jax.experimental import pallas as pl
from jax.experimental.pallas import tpu as pltpu


def _residual_stack_kernel(x_ref, w3_ref, w1_ref, mask_ref, o_ref, *,
                           n_res_layers, shifts):
    """One batch-block: apply the (weight-shared) residual layer n times + ReLU.

    x_ref:    (C_in, L)        activation slab, L = bblk*H*W lanes
    w3_ref:   (C_mid, 9*C_in)  fused 3x3 conv weights, tap-major columns
    w1_ref:   (C_out, C_mid)   1x1 conv weights
    mask_ref: (9, 1, L)        per-tap validity mask (zero padding at borders)
    o_ref:    (C_out, L)
    """
    x = x_ref[...]                       # (C_in, L) float32
    w3 = w3_ref[...]                     # (C_mid, 9*C_in)
    w1 = w1_ref[...]                     # (C_out, C_mid)
    hw_l = x.shape[-1]

    # Masks are layer-invariant: load / slice them once, outside the layer loop.
    m = mask_ref[...]                    # (9, 1, L)
    masks = [m[t] for t in range(9)]     # each (1, L)

    def layer(_, x):
        h = jnp.maximum(x, 0.0)          # ReLU

        # 3x3 conv (padding=1) as ONE fused matmul: stack the 9 rolled+masked
        # taps along the contraction axis -> (9*C_in, L), single MXU pass.
        parts = []
        for t, s in enumerate(shifts):
            if s == 0:
                parts.append(h)          # center tap: no shift, mask all-ones
            else:
                parts.append(pltpu.roll(h, shift=(-s) % hw_l, axis=1) * masks[t])
        slab = jnp.concatenate(parts, axis=0)                    # (9*C_in, L)

        mid = jnp.dot(w3, slab, preferred_element_type=jnp.float32)
        mid = jnp.maximum(mid, 0.0)      # ReLU
        # 1x1 conv + residual add.
        return x + jnp.dot(w1, mid, preferred_element_type=jnp.float32)

    # Same layer applied repeatedly: weights shared across iterations, exactly
    # like nn.ModuleList([ResidualLayer(...)] * n_res_layers).
    x = lax.fori_loop(0, n_res_layers, layer, x,
                      unroll=(n_res_layers <= 4))

    # Final ReLU of the stack.
    o_ref[...] = jnp.maximum(x, 0.0).astype(o_ref.dtype)


def _pick_batch_block(B, HW, target_lanes=2048):
    """Largest divisor of B such that the lane block is ~target_lanes wide,
    128-aligned, and (when B >= 2) the grid keeps >= 2 steps for v7x."""
    cap = max(1, min(B, target_lanes // max(HW, 1)))
    if B >= 2:
        cap = min(cap, max(1, B // 2))
    for d in range(cap, 0, -1):
        if B % d == 0 and (d * HW) % 128 == 0:
            return d
    return B  # full-extent block is always a legal BlockSpec


def residual_stack_forward(x_nchw, w3, w1, n_res_layers):
    """Pallas implementation of ResidualStack.forward.

    x_nchw: (B, C_in, H, W) float32
    w3:     (C_mid, C_in, 3, 3)  -- Conv2d(in, res_h_dim, 3, padding=1, bias=False)
    w1:     (C_out, C_mid, 1, 1) -- Conv2d(res_h_dim, out, 1, bias=False)
    """
    B, C_in, H, W = x_nchw.shape
    C_mid = w3.shape[0]
    C_out = w1.shape[0]
    assert w3.shape == (C_mid, C_in, 3, 3)
    assert w1.shape == (C_out, C_mid, 1, 1)
    assert C_out == C_in, "residual add requires out_channels == in_channels"
    HW = H * W

    bblk = _pick_batch_block(B, HW)
    n_blocks = B // bblk
    L = bblk * HW

    # Channel-major with batch folded onto the lane axis: (C, B*H*W).
    x_flat = jnp.transpose(x_nchw, (1, 0, 2, 3)).reshape(C_in, B * HW)

    # Fused 3x3 weights: column block t = dy*3+dx holds w3[:, :, dy, dx].
    w3_f = jnp.transpose(w3, (0, 2, 3, 1)).reshape(C_mid, 9 * C_in)
    w1_k = w1[:, :, 0, 0]                                  # (C_out, C_mid)

    # Per-tap lane shift and validity mask (implements the zero padding),
    # tiled across the bblk images sharing a lane block.  Any cross-image
    # wrap produced by the lane roll lands only on masked positions.
    r = jnp.arange(HW, dtype=jnp.int32)
    i_idx, j_idx = r // W, r % W
    shifts, masks = [], []
    for oy in (-1, 0, 1):
        for ox in (-1, 0, 1):
            shifts.append(oy * W + ox)
            valid = ((i_idx + oy >= 0) & (i_idx + oy < H) &
                     (j_idx + ox >= 0) & (j_idx + ox < W))
            masks.append(valid.astype(jnp.float32))
    masks = jnp.tile(jnp.stack(masks, axis=0), (1, bblk)).reshape(9, 1, L)

    kernel = functools.partial(_residual_stack_kernel,
                               n_res_layers=int(n_res_layers),
                               shifts=tuple(shifts))

    out_flat = pl.pallas_call(
        kernel,
        out_shape=jax.ShapeDtypeStruct((C_out, B * HW), x_nchw.dtype),
        grid_spec=pltpu.PrefetchScalarGridSpec(
            num_scalar_prefetch=0,
            grid=(n_blocks,),
            in_specs=[
                pl.BlockSpec((C_in, L), lambda b: (0, b)),          # activations
                pl.BlockSpec((C_mid, 9 * C_in), lambda b: (0, 0)),  # fused 3x3 w (resident)
                pl.BlockSpec((C_out, C_mid), lambda b: (0, 0)),     # 1x1 w (resident)
                pl.BlockSpec((9, 1, L), lambda b: (0, 0, 0)),       # tap masks (resident)
            ],
            out_specs=pl.BlockSpec((C_out, L), lambda b: (0, b)),
        ),
        compiler_params=pltpu.CompilerParams(
            # No cross-iteration accumulators -> batch-block axis shards
            # across both TensorCores on v7x.
            dimension_semantics=("parallel",),
        ),
    )(x_flat, w3_f, w1_k, masks)

    return jnp.transpose(out_flat.reshape(C_out, B, H, W), (1, 0, 2, 3))


def residual_stack_reference(x, w3, w1, n_res_layers):
    """Pure-JAX reference (matches the PyTorch module)."""
    dn = ("NCHW", "OIHW", "NCHW")
    for _ in range(n_res_layers):
        h = jax.nn.relu(x)
        h = lax.conv_general_dilated(h, w3, (1, 1), [(1, 1), (1, 1)],
                                     dimension_numbers=dn,
                                     precision=lax.Precision.HIGHEST)
        h = jax.nn.relu(h)
        h = lax.conv_general_dilated(h, w1, (1, 1), [(0, 0), (0, 0)],
                                     dimension_numbers=dn,
                                     precision=lax.Precision.HIGHEST)
        x = x + h
    return jax.nn.relu(x)


if __name__ == "__main__":
    # Small shapes consistent with the module: in_channels == out_channels.
    B, C, H, W = 2, 32, 16, 16
    res_h_dim = 16
    n_res_layers = 2

    key = jax.random.PRNGKey(0)
    kx, k3, k1 = jax.random.split(key, 3)

    x = jax.random.normal(kx, (B, C, H, W), dtype=jnp.float32)
    w3 = jax.random.normal(k3, (res_h_dim, C, 3, 3), dtype=jnp.float32) \
        * (1.0 / (3.0 * (C ** 0.5)))
    w1 = jax.random.normal(k1, (C, res_h_dim, 1, 1), dtype=jnp.float32) \
        * (1.0 / (res_h_dim ** 0.5))

    out = residual_stack_forward(x, w3, w1, n_res_layers)
    jax.block_until_ready(out)

    # Correctness vs XLA conv reference.  f32 MXU math should match to ~1e-5;
    # 5e-3 leaves margin for pass-precision differences while still catching
    # any structural error (those would be O(1)).
    assert out.shape == (B, C, H, W)
    assert bool(jnp.all(jnp.isfinite(out)))
    ref = residual_stack_reference(x, w3, w1, n_res_layers)
    max_err = float(jnp.max(jnp.abs(out - ref)))
    assert max_err < 5e-3, f"max abs error vs reference: {max_err}"

    print("KERNEL_OK")
</pallas_src>

<mosaic_0001>
module attributes {stable_mosaic.version = 11 : i64} {
  func.func @_residual_stack_kernel(%arg0: i32, %arg1: memref<32x256xf32, #tpu.memory_space<vmem>>, %arg2: memref<16x288xf32, #tpu.memory_space<vmem>>, %arg3: memref<32x16xf32, #tpu.memory_space<vmem>>, %arg4: memref<9x1x256xf32, #tpu.memory_space<vmem>>, %arg5: memref<32x256xf32, #tpu.memory_space<vmem>>) attributes {dimension_semantics = [#tpu.dimension_semantics<parallel>], iteration_bounds = array<i64: 2>, scalar_prefetch = 0 : i64, scratch_operands = 0 : i64, tpu.core_type = #tpu.core_type<tc>, window_params = [{transform_indices = @transform_0, window_bounds = array<i64: 32, 256>}, {pipeline_mode = #tpu.pipeline_mode<synchronous>, transform_indices = @transform_1, window_bounds = array<i64: 16, 288>}, {pipeline_mode = #tpu.pipeline_mode<synchronous>, transform_indices = @transform_2, window_bounds = array<i64: 32, 16>}, {pipeline_mode = #tpu.pipeline_mode<synchronous>, transform_indices = @transform_3, window_bounds = array<i64: 9, 1, 256>}, {transform_indices = @transform_4, window_bounds = array<i64: 32, 256>}]} {
    %c0 = arith.constant 0 : index
    %c0_0 = arith.constant 0 : index
    %0 = vector.load %arg1[%c0, %c0_0] : memref<32x256xf32, #tpu.memory_space<vmem>>, vector<32x256xf32>
    %c0_1 = arith.constant 0 : index
    %c0_2 = arith.constant 0 : index
    %1 = vector.load %arg2[%c0_1, %c0_2] : memref<16x288xf32, #tpu.memory_space<vmem>>, vector<16x288xf32>
    %c0_3 = arith.constant 0 : index
    %c0_4 = arith.constant 0 : index
    %2 = vector.load %arg3[%c0_3, %c0_4] : memref<32x16xf32, #tpu.memory_space<vmem>>, vector<32x16xf32>
    %c0_5 = arith.constant 0 : index
    %c0_6 = arith.constant 0 : index
    %c0_7 = arith.constant 0 : index
    %3 = vector.load %arg4[%c0_5, %c0_6, %c0_7] : memref<9x1x256xf32, #tpu.memory_space<vmem>>, vector<9x1x256xf32>
    %4 = vector.extract_strided_slice %3 {offsets = [0, 0, 0], sizes = [1, 1, 256], strides = [1, 1, 1]} : vector<9x1x256xf32> to vector<1x1x256xf32>
    %5 = vector.shape_cast %4 : vector<1x1x256xf32> to vector<1x256xf32>
    %6 = vector.extract_strided_slice %3 {offsets = [1, 0, 0], sizes = [1, 1, 256], strides = [1, 1, 1]} : vector<9x1x256xf32> to vector<1x1x256xf32>
    %7 = vector.shape_cast %6 : vector<1x1x256xf32> to vector<1x256xf32>
    %8 = vector.extract_strided_slice %3 {offsets = [2, 0, 0], sizes = [1, 1, 256], strides = [1, 1, 1]} : vector<9x1x256xf32> to vector<1x1x256xf32>
    %9 = vector.shape_cast %8 : vector<1x1x256xf32> to vector<1x256xf32>
    %10 = vector.extract_strided_slice %3 {offsets = [3, 0, 0], sizes = [1, 1, 256], strides = [1, 1, 1]} : vector<9x1x256xf32> to vector<1x1x256xf32>
    %11 = vector.shape_cast %10 : vector<1x1x256xf32> to vector<1x256xf32>
    %12 = vector.extract_strided_slice %3 {offsets = [5, 0, 0], sizes = [1, 1, 256], strides = [1, 1, 1]} : vector<9x1x256xf32> to vector<1x1x256xf32>
    %13 = vector.shape_cast %12 : vector<1x1x256xf32> to vector<1x256xf32>
    %14 = vector.extract_strided_slice %3 {offsets = [6, 0, 0], sizes = [1, 1, 256], strides = [1, 1, 1]} : vector<9x1x256xf32> to vector<1x1x256xf32>
    %15 = vector.shape_cast %14 : vector<1x1x256xf32> to vector<1x256xf32>
    %16 = vector.extract_strided_slice %3 {offsets = [7, 0, 0], sizes = [1, 1, 256], strides = [1, 1, 1]} : vector<9x1x256xf32> to vector<1x1x256xf32>
    %17 = vector.shape_cast %16 : vector<1x1x256xf32> to vector<1x256xf32>
    %18 = vector.extract_strided_slice %3 {offsets = [8, 0, 0], sizes = [1, 1, 256], strides = [1, 1, 1]} : vector<9x1x256xf32> to vector<1x1x256xf32>
    %19 = vector.shape_cast %18 : vector<1x1x256xf32> to vector<1x256xf32>
    %c0_i32 = arith.constant 0 : i32
    %cst = arith.constant 0.000000e+00 : f32
    %20 = vector.broadcast %cst : f32 to vector<32x256xf32>
    %21 = arith.maximumf %0, %20 : vector<32x256xf32>
    %c17_i32 = arith.constant 17 : i32
    %22 = tpu.dynamic_rotate %21 by %c17_i32 dim 1 : vector<32x256xf32>, i32 -> vector<32x256xf32>
    %23 = vector.broadcast %5 : vector<1x256xf32> to vector<32x256xf32>
    %24 = arith.mulf %22, %23 : vector<32x256xf32>
    %c16_i32 = arith.constant 16 : i32
    %25 = tpu.dynamic_rotate %21 by %c16_i32 dim 1 : vector<32x256xf32>, i32 -> vector<32x256xf32>
    %26 = vector.broadcast %7 : vector<1x256xf32> to vector<32x256xf32>
    %27 = arith.mulf %25, %26 : vector<32x256xf32>
    %c15_i32 = arith.constant 15 : i32
    %28 = tpu.dynamic_rotate %21 by %c15_i32 dim 1 : vector<32x256xf32>, i32 -> vector<32x256xf32>
    %29 = vector.broadcast %9 : vector<1x256xf32> to vector<32x256xf32>
    %30 = arith.mulf %28, %29 : vector<32x256xf32>
    %c1_i32 = arith.constant 1 : i32
    %31 = tpu.dynamic_rotate %21 by %c1_i32 dim 1 : vector<32x256xf32>, i32 -> vector<32x256xf32>
    %32 = vector.broadcast %11 : vector<1x256xf32> to vector<32x256xf32>
    %33 = arith.mulf %31, %32 : vector<32x256xf32>
    %c255_i32 = arith.constant 255 : i32
    %34 = tpu.dynamic_rotate %21 by %c255_i32 dim 1 : vector<32x256xf32>, i32 -> vector<32x256xf32>
    %35 = vector.broadcast %13 : vector<1x256xf32> to vector<32x256xf32>
    %36 = arith.mulf %34, %35 : vector<32x256xf32>
    %c241_i32 = arith.constant 241 : i32
    %37 = tpu.dynamic_rotate %21 by %c241_i32 dim 1 : vector<32x256xf32>, i32 -> vector<32x256xf32>
    %38 = vector.broadcast %15 : vector<1x256xf32> to vector<32x256xf32>
    %39 = arith.mulf %37, %38 : vector<32x256xf32>
    %c240_i32 = arith.constant 240 : i32
    %40 = tpu.dynamic_rotate %21 by %c240_i32 dim 1 : vector<32x256xf32>, i32 -> vector<32x256xf32>
    %41 = vector.broadcast %17 : vector<1x256xf32> to vector<32x256xf32>
    %42 = arith.mulf %40, %41 : vector<32x256xf32>
    %c239_i32 = arith.constant 239 : i32
    %43 = tpu.dynamic_rotate %21 by %c239_i32 dim 1 : vector<32x256xf32>, i32 -> vector<32x256xf32>
    %44 = vector.broadcast %19 : vector<1x256xf32> to vector<32x256xf32>
    %45 = arith.mulf %43, %44 : vector<32x256xf32>
    %46 = tpu.concatenate %24, %27, %30, %33, %21, %36, %39, %42, %45 in 0 : vector<32x256xf32>, vector<32x256xf32>, vector<32x256xf32>, vector<32x256xf32>, vector<32x256xf32>, vector<32x256xf32>, vector<32x256xf32>, vector<32x256xf32>, vector<32x256xf32> -> vector<288x256xf32>
    %cst_8 = arith.constant dense<0.000000e+00> : vector<16x256xf32>
    %47 = tpu.matmul %1, %46, %cst_8 {dimension_numbers = #tpu.dot_dimension_numbers<[1], [0], [0], [1], [0, 0, 1, 1], [], []>} : vector<16x288xf32>, vector<288x256xf32>, vector<16x256xf32> -> vector<16x256xf32>
    %cst_9 = arith.constant 0.000000e+00 : f32
    %48 = vector.broadcast %cst_9 : f32 to vector<16x256xf32>
    %49 = arith.maximumf %47, %48 : vector<16x256xf32>
    %cst_10 = arith.constant dense<0.000000e+00> : vector<32x256xf32>
    %50 = tpu.matmul %2, %49, %cst_10 {dimension_numbers = #tpu.dot_dimension_numbers<[1], [0], [0], [1], [0, 0, 1, 1], [], []>} : vector<32x16xf32>, vector<16x256xf32>, vector<32x256xf32> -> vector<32x256xf32>
    %51 = arith.addf %0, %50 : vector<32x256xf32>
    %c1_i32_11 = arith.constant 1 : i32
    %cst_12 = arith.constant 0.000000e+00 : f32
    %52 = vector.broadcast %cst_12 : f32 to vector<32x256xf32>
    %53 = arith.maximumf %51, %52 : vector<32x256xf32>
    %c17_i32_13 = arith.constant 17 : i32
    %54 = tpu.dynamic_rotate %53 by %c17_i32_13 dim 1 : vector<32x256xf32>, i32 -> vector<32x256xf32>
    %55 = vector.broadcast %5 : vector<1x256xf32> to vector<32x256xf32>
    %56 = arith.mulf %54, %55 : vector<32x256xf32>
    %c16_i32_14 = arith.constant 16 : i32
    %57 = tpu.dynamic_rotate %53 by %c16_i32_14 dim 1 : vector<32x256xf32>, i32 -> vector<32x256xf32>
    %58 = vector.broadcast %7 : vector<1x256xf32> to vector<32x256xf32>
    %59 = arith.mulf %57, %58 : vector<32x256xf32>
    %c15_i32_15 = arith.constant 15 : i32
    %60 = tpu.dynamic_rotate %53 by %c15_i32_15 dim 1 : vector<32x256xf32>, i32 -> vector<32x256xf32>
    %61 = vector.broadcast %9 : vector<1x256xf32> to vector<32x256xf32>
    %62 = arith.mulf %60, %61 : vector<32x256xf32>
    %c1_i32_16 = arith.constant 1 : i32
    %63 = tpu.dynamic_rotate %53 by %c1_i32_16 dim 1 : vector<32x256xf32>, i32 -> vector<32x256xf32>
    %64 = vector.broadcast %11 : vector<1x256xf32> to vector<32x256xf32>
    %65 = arith.mulf %63, %64 : vector<32x256xf32>
    %c255_i32_17 = arith.constant 255 : i32
    %66 = tpu.dynamic_rotate %53 by %c255_i32_17 dim 1 : vector<32x256xf32>, i32 -> vector<32x256xf32>
    %67 = vector.broadcast %13 : vector<1x256xf32> to vector<32x256xf32>
    %68 = arith.mulf %66, %67 : vector<32x256xf32>
    %c241_i32_18 = arith.constant 241 : i32
    %69 = tpu.dynamic_rotate %53 by %c241_i32_18 dim 1 : vector<32x256xf32>, i32 -> vector<32x256xf32>
    %70 = vector.broadcast %15 : vector<1x256xf32> to vector<32x256xf32>
    %71 = arith.mulf %69, %70 : vector<32x256xf32>
    %c240_i32_19 = arith.constant 240 : i32
    %72 = tpu.dynamic_rotate %53 by %c240_i32_19 dim 1 : vector<32x256xf32>, i32 -> vector<32x256xf32>
    %73 = vector.broadcast %17 : vector<1x256xf32> to vector<32x256xf32>
    %74 = arith.mulf %72, %73 : vector<32x256xf32>
    %c239_i32_20 = arith.constant 239 : i32
    %75 = tpu.dynamic_rotate %53 by %c239_i32_20 dim 1 : vector<32x256xf32>, i32 -> vector<32x256xf32>
    %76 = vector.broadcast %19 : vector<1x256xf32> to vector<32x256xf32>
    %77 = arith.mulf %75, %76 : vector<32x256xf32>
    %78 = tpu.concatenate %56, %59, %62, %65, %53, %68, %71, %74, %77 in 0 : vector<32x256xf32>, vector<32x256xf32>, vector<32x256xf32>, vector<32x256xf32>, vector<32x256xf32>, vector<32x256xf32>, vector<32x256xf32>, vector<32x256xf32>, vector<32x256xf32> -> vector<288x256xf32>
    %cst_21 = arith.constant dense<0.000000e+00> : vector<16x256xf32>
    %79 = tpu.matmul %1, %78, %cst_21 {dimension_numbers = #tpu.dot_dimension_numbers<[1], [0], [0], [1], [0, 0, 1, 1], [], []>} : vector<16x288xf32>, vector<288x256xf32>, vector<16x256xf32> -> vector<16x256xf32>
    %cst_22 = arith.constant 0.000000e+00 : f32
    %80 = vector.broadcast %cst_22 : f32 to vector<16x256xf32>
    %81 = arith.maximumf %79, %80 : vector<16x256xf32>
    %cst_23 = arith.constant dense<0.000000e+00> : vector<32x256xf32>
    %82 = tpu.matmul %2, %81, %cst_23 {dimension_numbers = #tpu.dot_dimension_numbers<[1], [0], [0], [1], [0, 0, 1, 1], [], []>} : vector<32x16xf32>, vector<16x256xf32>, vector<32x256xf32> -> vector<32x256xf32>
    %83 = arith.addf %51, %82 : vector<32x256xf32>
    %cst_24 = arith.constant 0.000000e+00 : f32
    %84 = vector.broadcast %cst_24 : f32 to vector<32x256xf32>
    %85 = arith.maximumf %83, %84 : vector<32x256xf32>
    %c0_25 = arith.constant 0 : index
    %c0_26 = arith.constant 0 : index
    %86 = vector.load %arg5[%c0_25, %c0_26] : memref<32x256xf32, #tpu.memory_space<vmem>>, vector<32x256xf32>
    tpu.vector_store %arg5[%c0_25, %c0_26], %85 {strides = array<i32>} : memref<32x256xf32, #tpu.memory_space<vmem>>, vector<32x256xf32>,
    return
  }
  func.func @transform_0(%arg0: i32) -> (i32, i32) {
    %c0_i32 = arith.constant 0 : i32
    %c0_i32_0 = arith.constant 0 : i32
    return %c0_i32, %arg0 : i32, i32
  }
  func.func @transform_1(%arg0: i32) -> (i32, i32) {
    %c0_i32 = arith.constant 0 : i32
    %c0_i32_0 = arith.constant 0 : i32
    %c0_i32_1 = arith.constant 0 : i32
    return %c0_i32, %c0_i32_0 : i32, i32
  }
  func.func @transform_2(%arg0: i32) -> (i32, i32) {
    %c0_i32 = arith.constant 0 : i32
    %c0_i32_0 = arith.constant 0 : i32
    %c0_i32_1 = arith.constant 0 : i32
    return %c0_i32, %c0_i32_0 : i32, i32
  }
  func.func @transform_3(%arg0: i32) -> (i32, i32, i32) {
    %c0_i32 = arith.constant 0 : i32
    %c0_i32_0 = arith.constant 0 : i32
    %c0_i32_1 = arith.constant 0 : i32
    %c0_i32_2 = arith.constant 0 : i32
    return %c0_i32, %c0_i32_0, %c0_i32_1 : i32, i32, i32
  }
  func.func @transform_4(%arg0: i32) -> (i32, i32) {
    %c0_i32 = arith.constant 0 : i32
    %c0_i32_0 = arith.constant 0 : i32
    return %c0_i32, %arg0 : i32, i32
  }
}

</mosaic_0001>

<llo_original>
// kernel: tpu_custom_call.1
$region0: #{tpu_custom_call.1}
  #allocation0 [shape = 'u32[]', space=smem, size = 0x4, offset = 0x4, fixed_abs, tag = 'smem constant byte address 0x4 - core index']
  #allocation1 [shape = 'u32[144,128]{1,0:T(1,128)}', space=vmem, size = 0x12000, scoped, tag = 'internal scratch']
  %s0 = inlined_call_operand.hbm [shape: f32[32,512], index: 0, kind: input, shape index: {}]
  %s1 = inlined_call_operand.vmem [shape: f32[16,288], index: 1, kind: input, shape index: {}]
  %s2 = inlined_call_operand.vmem [shape: f32[32,16], index: 2, kind: input, shape index: {}]
  %s3 = inlined_call_operand.hbm [shape: f32[9,1,256], index: 3, kind: input, shape index: {}]
  %s4 = inlined_call_operand.hbm [shape: f32[32,512], index: 4, kind: output, shape index: {}]
  %s5 = sld [smem:[#allocation0]]
  $region57: #{tpu_custom_call.1} parent=0
    _
  %s7 = ssub.s32 1, %s5
  %s8 = scalar_select 0, %s7, %s5
  $region1: #{tpu_custom_call.1} parent=0
    #allocation2 [shape = 'u8[65536]{0}', space=vmem, size = 0x10000, scoped, tag = 'input window, operand 0']
    #allocation3 [shape = 's32[2]{0}', space=sflag, size = 0x8, scoped, tag = 'scoped memory for tpu_custom_call.1']
    #allocation4 [shape = 's32[2]{0}', space=sflag, size = 0x8, scoped, tag = 'scoped memory for tpu_custom_call.1']
    #allocation5 [shape = 'u8[9216]{0}', space=vmem, size = 0x2400, scoped, tag = 'input window, operand 3, single buffered']
    #allocation6 [shape = 's32[1]{0}', space=sflag, size = 0x4, scoped, tag = 'scoped memory for tpu_custom_call.1']
    #allocation7 [shape = 'u8[65536]{0}', space=vmem, size = 0x10000, scoped, tag = 'output window, operand 0']
    %9 = vsyncpa [#allocation3], 0
    %s10 = scalar_lea.sflag [#allocation3], 1
    %11 = vsyncpa %s10, 0
    %12 = vsyncpa [#allocation6], 0
    %13 = vsyncpa [#allocation4], 0
    %s14 = scalar_lea.sflag [#allocation4], 1
    %15 = vsyncpa %s14, 0
    loop: start=0, step=1, limit=4
    $region2: #{tpu_custom_call.1} parent=1 // loop_pre_header
      _
    $region3: #{tpu_custom_call.1} parent=1 // loop_header
      %s17 = sphi 0, %s21
      %p18 = scmp.ge.s32.totalorder %s17, 4
      %s27 = sphi 0, %s29
      %s30 = sphi 0, %s27
      %s31 = sphi 0, %s30
      %s47 = sphi 0, %s31
      %s51 = sphi 0, %s51
      %s53 = sphi 0, %s51
      %s54 = sphi 0, %s53
      %s68 = sphi 0, %s54
      %s72 = sphi 0, %s72
      %s74 = sphi 0, %s72
      %s75 = sphi 0, %s74
      %s89 = sphi 0, %s75
      %s93 = sphi 0, %s93
      %s95 = sphi 0, %s93
      %s96 = sphi 0, %s95
      %s110 = sphi 0, %s96
      %s116 = sphi 0, %s118
      %s119 = sphi 0, %s116
      %s120 = sphi 0, %s119
      %s136 = sphi 0, %s120
    $region4: #{tpu_custom_call.1} parent=1 // loop_header_branch
      %20 = sbr.rel (%p18) target = $region8
    $region5: #{tpu_custom_call.1} parent=1 // loop_body
      %s22 = ssub.s32 %s17, 1
      %s23 = ssub.s32 %s17, 2
      %s24 = sadd.s32 %s17, 1
      %s25 = ssub.s32 %s17, %s24
      %p26 = scmp.eq.s32.totalorder %s25, 0
      %s28 = sadd.s32 %s27, 1
      %s29 = scalar_select %p26, %s27, %s28
      %p32 = pneg %p26
      %p33 = scmp.eq.s32.totalorder %s17, 1
      %p34 = por %p32, %p33
      %p35 = scmp.ne.s32.totalorder %s27, %s30
      %p36 = scmp.eq.s32.totalorder %s17, 0
      %p37 = por %p35, %p36
      %p38 = scmp.ne.s32.totalorder %s27, %s30
      %p39 = scmp.eq.s32.totalorder %s22, 1
      %p40 = por %p38, %p39
      %p41 = scmp.ne.s32.totalorder %s30, %s31
      %p42 = scmp.eq.s32.totalorder %s22, 0
      %p43 = por %p41, %p42
      %p44 = scmp.ne.s32.totalorder %s30, %s31
      %p45 = scmp.eq.s32.totalorder %s23, 1
      %p46 = por %p44, %p45
      %p48 = scmp.ne.s32.totalorder %s31, %s47
      %p49 = scmp.eq.s32.totalorder %s23, 0
      %p50 = por %p48, %p49
      %s52 = sadd.s32 %s51, 1
      %p55 = scmp.eq.s32.totalorder %s17, 1
      %p56 = scmp.ne.s32.totalorder %s51, %s53
      %p57 = scmp.eq.s32.totalorder %s17, 0
      %p58 = por %p56, %p57
      %p59 = scmp.ne.s32.totalorder %s51, %s53
      %p60 = scmp.eq.s32.totalorder %s22, 1
      %p61 = por %p59, %p60
      %p62 = scmp.ne.s32.totalorder %s53, %s54
      %p63 = scmp.eq.s32.totalorder %s22, 0
      %p64 = por %p62, %p63
      %p65 = scmp.ne.s32.totalorder %s53, %s54
      %p66 = scmp.eq.s32.totalorder %s23, 1
      %p67 = por %p65, %p66
      %p69 = scmp.ne.s32.totalorder %s54, %s68
      %p70 = scmp.eq.s32.totalorder %s23, 0
      %p71 = por %p69, %p70
      %s73 = sadd.s32 %s72, 1
      %p76 = scmp.eq.s32.totalorder %s17, 1
      %p77 = scmp.ne.s32.totalorder %s72, %s74
      %p78 = scmp.eq.s32.totalorder %s17, 0
      %p79 = por %p77, %p78
      %p80 = scmp.ne.s32.totalorder %s72, %s74
      %p81 = scmp.eq.s32.totalorder %s22, 1
      %p82 = por %p80, %p81
      %p83 = scmp.ne.s32.totalorder %s74, %s75
      %p84 = scmp.eq.s32.totalorder %s22, 0
      %p85 = por %p83, %p84
      %p86 = scmp.ne.s32.totalorder %s74, %s75
      %p87 = scmp.eq.s32.totalorder %s23, 1
      %p88 = por %p86, %p87
      %p90 = scmp.ne.s32.totalorder %s75, %s89
      %p91 = scmp.eq.s32.totalorder %s23, 0
      %p92 = por %p90, %p91
      %s94 = sadd.s32 %s93, 1
      %p97 = scmp.eq.s32.totalorder %s17, 1
      %p98 = scmp.ne.s32.totalorder %s93, %s95
      %p99 = scmp.eq.s32.totalorder %s17, 0
      %p100 = por %p98, %p99
      %p101 = scmp.ne.s32.totalorder %s93, %s95
      %p102 = scmp.eq.s32.totalorder %s22, 1
      %p103 = por %p101, %p102
      %p104 = scmp.ne.s32.totalorder %s95, %s96
      %p105 = scmp.eq.s32.totalorder %s22, 0
      %p106 = por %p104, %p105
      %p107 = scmp.ne.s32.totalorder %s95, %s96
      %p108 = scmp.eq.s32.totalorder %s23, 1
      %p109 = por %p107, %p108
      %p111 = scmp.ne.s32.totalorder %s96, %s110
      %p112 = scmp.eq.s32.totalorder %s23, 0
      %p113 = por %p111, %p112
      %s114 = ssub.s32 %s17, %s24
      %p115 = scmp.eq.s32.totalorder %s114, 0
      %s117 = sadd.s32 %s116, 1
      %s118 = scalar_select %p115, %s116, %s117
      %p121 = pneg %p115
      %p122 = scmp.eq.s32.totalorder %s17, 1
      %p123 = por %p121, %p122
      %p124 = scmp.ne.s32.totalorder %s116, %s119
      %p125 = scmp.eq.s32.totalorder %s17, 0
      %p126 = por %p124, %p125
      %p127 = scmp.ne.s32.totalorder %s116, %s119
      %p128 = scmp.eq.s32.totalorder %s22, 1
      %p129 = por %p127, %p128
      %p130 = scmp.ne.s32.totalorder %s119, %s120
      %p131 = scmp.eq.s32.totalorder %s22, 0
      %p132 = por %p130, %p131
      %p133 = scmp.ne.s32.totalorder %s119, %s120
      %p134 = scmp.eq.s32.totalorder %s23, 1
      %p135 = por %p133, %p134
      %p137 = scmp.ne.s32.totalorder %s120, %s136
      %p138 = scmp.eq.s32.totalorder %s23, 0
      %p139 = por %p137, %p138
      %p140 = scmp.le.s32.totalorder 1, %s17
      %p141 = scmp.lt.s32.totalorder %s17, 3
      %p142 = pnand %p140, %p141
      %p143 = pneg %p142
      // Predicated region
      $region9: #{tpu_custom_call.1} parent=5 // pred_check
        _
      $region10: #{tpu_custom_call.1} parent=5 // pred_check_branch
        %145 = sbr.rel (%p142) target = $region12
      $region11: #{tpu_custom_call.1} parent=5 // pred_region
        %s146 = ssub.s32 %s17, 1
        // Predicated region
        $region13: #{tpu_custom_call.1} parent=11 // pred_check
          %p147 = pneg %p64
        $region14: #{tpu_custom_call.1} parent=11 // pred_check_branch
          %149 = sbr.rel (%p147) target = $region16
        $region15: #{tpu_custom_call.1} parent=11 // pred_region
          _
        $region16: #{tpu_custom_call.1} parent=11 // pred_fallthru
          _
        // Predicated region
        $region17: #{tpu_custom_call.1} parent=11 // pred_check
          %p150 = pneg %p85
        $region18: #{tpu_custom_call.1} parent=11 // pred_check_branch
          %152 = sbr.rel (%p150) target = $region20
        $region19: #{tpu_custom_call.1} parent=11 // pred_region
          _
        $region20: #{tpu_custom_call.1} parent=11 // pred_fallthru
          _
        // Predicated region
        $region21: #{tpu_custom_call.1} parent=11 // pred_check
          %p153 = pneg %p106
        $region22: #{tpu_custom_call.1} parent=11 // pred_check_branch
          %155 = sbr.rel (%p153) target = $region24
        $region23: #{tpu_custom_call.1} parent=11 // pred_region
          %s157 = ssub.s32 288, 288
          %158 = vsyncadd [#allocation6], %s157
          %s159 = sshll.u32 [#allocation5], 4
          %s160 = int_to_ptr.vmem [resolvable:$true] %s159
          %165 = dma.hbm_to_vmem [thread:$0]  %s3, 288, %s160, [#allocation6], 32, 32, 2
        $region24: #{tpu_custom_call.1} parent=11 // pred_fallthru
          _
      $region12: #{tpu_custom_call.1} parent=5 // pred_fallthru
        _
      %p166 = scmp.lt.s32.totalorder %s17, 2
      // Predicated region
      $region25: #{tpu_custom_call.1} parent=5 // pred_check
        %p167 = pneg %p166
      $region26: #{tpu_custom_call.1} parent=5 // pred_check_branch
        %169 = sbr.rel (%p167) target = $region28
      $region27: #{tpu_custom_call.1} parent=5 // pred_region
        // Predicated region
        $region29: #{tpu_custom_call.1} parent=27 // pred_check
          %p170 = pneg %p37
        $region30: #{tpu_custom_call.1} parent=27 // pred_check_branch
          %172 = sbr.rel (%p170) target = $region32
        $region31: #{tpu_custom_call.1} parent=27 // pred_region
          %s173 = sand.u32 %s27, 1
          %s174 = scalar_lea.sflag [#allocation3], %s173
          %s175 = sand.u32 %s27, 1
          %s176 = smul.addr %s175, 64
          %s177 = scalar_lea.vmem [#allocation2], %s176
          %s178 = smul.u32 2, %s17
          %s180 = ssub.s32 1024, 1024
          %181 = vsyncadd %s174, %s180
          %s182 = smul.addr %s178, 128
          %s183 = scalar_lea.hbm %s0, %s182
          %s184 = sshll.u32 %s177, 4
          %s185 = int_to_ptr.vmem [resolvable:$true] %s184
          %190 = dma.hbm_to_vmem [thread:$0]  %s183, 1024, %s185, %s174, 512, 256, 16
        $region32: #{tpu_custom_call.1} parent=27 // pred_fallthru
          _
      $region28: #{tpu_custom_call.1} parent=5 // pred_fallthru
        _
      %p191 = scmp.le.s32.totalorder 1, %s17
      %p192 = scmp.lt.s32.totalorder %s17, 3
      %p193 = pnand %p191, %p192
      %p194 = pneg %p193
      // Predicated region
      $region33: #{tpu_custom_call.1} parent=5 // pred_check
        _
      $region34: #{tpu_custom_call.1} parent=5 // pred_check_branch
        %196 = sbr.rel (%p193) target = $region36
      $region35: #{tpu_custom_call.1} parent=5 // pred_region
        %s197 = ssub.s32 %s17, 1
        %s198 = sand.u32 %s30, 1
        %s199 = scalar_lea.sflag [#allocation3], %s198
        %s200 = sand.u32 %s30, 1
        %s201 = smul.addr %s200, 64
        %s202 = scalar_lea.vmem [#allocation2], %s201
        // Predicated region
        $region37: #{tpu_custom_call.1} parent=35 // pred_check
          %p203 = pneg %p43
        $region38: #{tpu_custom_call.1} parent=35 // pred_check_branch
          %205 = sbr.rel (%p203) target = $region40
        $region39: #{tpu_custom_call.1} parent=35 // pred_region
          %206 = dma.done %s199, 1024
        $region40: #{tpu_custom_call.1} parent=35 // pred_fallthru
          _
        // Predicated region
        $region41: #{tpu_custom_call.1} parent=35 // pred_check
          %p207 = pneg %p106
        $region42: #{tpu_custom_call.1} parent=35 // pred_check_branch
          %209 = sbr.rel (%p207) target = $region44
        $region43: #{tpu_custom_call.1} parent=35 // pred_region
          %210 = dma.done [#allocation6], 288
        $region44: #{tpu_custom_call.1} parent=35 // pred_fallthru
          _
        %s211 = sand.u32 %s30, 1
        %s212 = scalar_lea.sflag [#allocation3], %s211
        %s213 = sand.u32 %s30, 1
        %s214 = smul.addr %s213, 64
        %s215 = scalar_lea.vmem [#allocation2], %s214
        %p216 = pneg %p43
        %p217 = pneg %p40
        %p218 = pneg %p64
        %p219 = pneg %p61
        %p220 = pneg %p85
        %p221 = pneg %p82
        %p222 = pneg %p106
        %p223 = pneg %p103
        %p224 = pneg %p132
        %p225 = pneg %p129
        %s226 = sand.u32 %s119, 1
        %s227 = scalar_lea.sflag [#allocation4], %s226
        %s228 = sand.u32 %s119, 1
        %s229 = smul.addr %s228, 64
        %s230 = scalar_lea.vmem [#allocation7], %s229
        %s231 = smul.u32 2, %s22
        %s232 = smul.u32 2, %s22
        %v233 = vld [vmem:[%s202] sm:$0xff]
        %v234 = vld [vmem:[%s202 + $0x8] sm:$0xff]
        %v235 = vld [vmem:[%s202 + $0x10] sm:$0xff]
        %v236 = vld [vmem:[%s202 + $0x18] sm:$0xff]
        %v237 = vld [vmem:[%s202 + $0x20] sm:$0xff]
        %v238 = vld [vmem:[%s202 + $0x28] sm:$0xff]
        %v239 = vld [vmem:[%s202 + $0x30] sm:$0xff]
        %v240 = vld [vmem:[%s202 + $0x38] sm:$0xff]
        %v241 = vld [vmem:[%s1] sm:$0xff]
        %v242 = vld [vmem:[%s1 + $0x8] sm:$0xff]
        %v243 = vld [vmem:[%s1 + $0x10] sm:$0xff]
        %v244 = vld [vmem:[%s1 + $0x18] sm:$0xff]
        %v245 = vld [vmem:[%s1 + $0x20] sm:$0xff]
        %v246 = vld [vmem:[%s1 + $0x28] sm:$0xff]
        %v247 = vld [vmem:[%s2] sm:$0xff]
        %v248 = vld [vmem:[%s2 + $0x8] sm:$0xff]
        %v249 = vld [vmem:[%s2 + $0x10] sm:$0xff]
        %v250 = vld [vmem:[%s2 + $0x18] sm:$0xff]
        %v251 = vld [vmem:[#allocation5] sm:$0x3]
        %v252 = vld [vmem:[#allocation5 + $0x2] sm:$0x3]
        %v253 = vld [vmem:[#allocation5 + $0x4] sm:$0x3]
        %v254 = vld [vmem:[#allocation5 + $0x6] sm:$0x3]
        %v255 = vld [vmem:[#allocation5 + $0xa] sm:$0x3]
        %v256 = vld [vmem:[#allocation5 + $0xc] sm:$0x3]
        %v257 = vld [vmem:[#allocation5 + $0xe] sm:$0x3]
        %v258 = vld [vmem:[#allocation5 + $0x10] sm:$0x3]
        %v259 = vmax.f32 %v233, 0.0
        %v260 = vmax.f32 %v234, 0.0
        %v261 = vmax.f32 %v235, 0.0
        %v262 = vmax.f32 %v236, 0.0
        %v263 = vmax.f32 %v237, 0.0
        %v264 = vmax.f32 %v238, 0.0
        %v265 = vmax.f32 %v239, 0.0
        %v266 = vmax.f32 %v240, 0.0
        %267 = vrot.lane.b32.xlu0 %v259, 17
        %v268 = vpop.permute.xlu0 %267
        %269 = vrot.lane.b32.xlu0 %v261, 17
        %v270 = vpop.permute.xlu0 %269
        %271 = vrot.lane.b32.xlu0 %v263, 17
        %v272 = vpop.permute.xlu0 %271
        %273 = vrot.lane.b32.xlu0 %v265, 17
        %v274 = vpop.permute.xlu0 %273
        %275 = vrot.lane.b32.xlu0 %v260, 17
        %v276 = vpop.permute.xlu0 %275
        %277 = vrot.lane.b32.xlu0 %v262, 17
        %v278 = vpop.permute.xlu0 %277
        %279 = vrot.lane.b32.xlu0 %v264, 17
        %v280 = vpop.permute.xlu0 %279
        %281 = vrot.lane.b32.xlu0 %v266, 17
        %v282 = vpop.permute.xlu0 %281
        %v283 = vlaneseq
        %v284 = vand.u32 %v283, 127
        %vm285 = vcmp.lt.s32.totalorder %v284, 17
        %v286 = vsel %vm285, %v268, %v276
        %v287 = vsel %vm285, %v270, %v278
        %v288 = vsel %vm285, %v272, %v280
        %v289 = vsel %vm285, %v274, %v282
        %v290 = vsel %vm285, %v276, %v268
        %v291 = vsel %vm285, %v278, %v270
        %v292 = vsel %vm285, %v280, %v272
        %v293 = vsel %vm285, %v282, %v274
        %v295 = vlaneseq
        %v296 = vshrl.u32 %v295, 7
        %v297 = vsub.s32 0, %v296
        %v298 = vrot.slane %v251, %v297
        %v299 = vlaneseq
        %v300 = vshrl.u32 %v299, 7
        %v301 = vsub.s32 1, %v300
        %v302 = vrot.slane %v251, %v301
        %v305 = vmul.f32 %v290, %v298
        %v306 = vmul.f32 %v286, %v302
        %v307 = vmul.f32 %v291, %v298
        %v308 = vmul.f32 %v287, %v302
        %v309 = vmul.f32 %v292, %v298
        %v310 = vmul.f32 %v288, %v302
        %v311 = vmul.f32 %v293, %v298
        %v312 = vmul.f32 %v289, %v302
        %313 = vrot.lane.b32.xlu0 %v259, 16
        %v314 = vpop.permute.xlu0 %313
        %315 = vrot.lane.b32.xlu0 %v261, 16
        %v316 = vpop.permute.xlu0 %315
        %317 = vrot.lane.b32.xlu0 %v263, 16
        %v318 = vpop.permute.xlu0 %317
        %319 = vrot.lane.b32.xlu0 %v265, 16
        %v320 = vpop.permute.xlu0 %319
        %321 = vrot.lane.b32.xlu0 %v260, 16
        %v322 = vpop.permute.xlu0 %321
        %323 = vrot.lane.b32.xlu0 %v262, 16
        %v324 = vpop.permute.xlu0 %323
        %325 = vrot.lane.b32.xlu0 %v264, 16
        %v326 = vpop.permute.xlu0 %325
        %327 = vrot.lane.b32.xlu0 %v266, 16
        %v328 = vpop.permute.xlu0 %327
        %vm329 = vcmp.lt.s32.totalorder %v284, 16
        %v330 = vsel %vm329, %v314, %v322
        %v331 = vsel %vm329, %v316, %v324
        %v332 = vsel %vm329, %v318, %v326
        %v333 = vsel %vm329, %v320, %v328
        %v334 = vsel %vm329, %v322, %v314
        %v335 = vsel %vm329, %v324, %v316
        %v336 = vsel %vm329, %v326, %v318
        %v337 = vsel %vm329, %v328, %v320
        %v339 = vlaneseq
        %v340 = vshrl.u32 %v339, 7
        %v341 = vsub.s32 0, %v340
        %v342 = vrot.slane %v252, %v341
        %v343 = vlaneseq
        %v344 = vshrl.u32 %v343, 7
        %v345 = vsub.s32 1, %v344
        %v346 = vrot.slane %v252, %v345
        %v349 = vmul.f32 %v334, %v342
        %v350 = vmul.f32 %v330, %v346
        %v351 = vmul.f32 %v335, %v342
        %v352 = vmul.f32 %v331, %v346
        %v353 = vmul.f32 %v336, %v342
        %v354 = vmul.f32 %v332, %v346
        %v355 = vmul.f32 %v337, %v342
        %v356 = vmul.f32 %v333, %v346
        %357 = vrot.lane.b32.xlu0 %v259, 15
        %v358 = vpop.permute.xlu0 %357
        %359 = vrot.lane.b32.xlu0 %v261, 15
        %v360 = vpop.permute.xlu0 %359
        %361 = vrot.lane.b32.xlu0 %v263, 15
        %v362 = vpop.permute.xlu0 %361
        %363 = vrot.lane.b32.xlu0 %v265, 15
        %v364 = vpop.permute.xlu0 %363
        %365 = vrot.lane.b32.xlu0 %v260, 15
        %v366 = vpop.permute.xlu0 %365
        %367 = vrot.lane.b32.xlu0 %v262, 15
        %v368 = vpop.permute.xlu0 %367
        %369 = vrot.lane.b32.xlu0 %v264, 15
        %v370 = vpop.permute.xlu0 %369
        %371 = vrot.lane.b32.xlu0 %v266, 15
        %v372 = vpop.permute.xlu0 %371
        %vm373 = vcmp.lt.s32.totalorder %v284, 15
        %v374 = vsel %vm373, %v358, %v366
        %v375 = vsel %vm373, %v360, %v368
        %v376 = vsel %vm373, %v362, %v370
        %v377 = vsel %vm373, %v364, %v372
        %v378 = vsel %vm373, %v366, %v358
        %v379 = vsel %vm373, %v368, %v360
        %v380 = vsel %vm373, %v370, %v362
        %v381 = vsel %vm373, %v372, %v364
        %v383 = vlaneseq
        %v384 = vshrl.u32 %v383, 7
        %v385 = vsub.s32 0, %v384
        %v386 = vrot.slane %v253, %v385
        %v387 = vlaneseq
        %v388 = vshrl.u32 %v387, 7
        %v389 = vsub.s32 1, %v388
        %v390 = vrot.slane %v253, %v389
        %v393 = vmul.f32 %v378, %v386
        %v394 = vmul.f32 %v374, %v390
        %v395 = vmul.f32 %v379, %v386
        %v396 = vmul.f32 %v375, %v390
        %v397 = vmul.f32 %v380, %v386
        %v398 = vmul.f32 %v376, %v390
        %v399 = vmul.f32 %v381, %v386
        %v400 = vmul.f32 %v377, %v390
        %401 = vrot.lane.b32.xlu0 %v259, 1
        %v402 = vpop.permute.xlu0 %401
        %403 = vrot.lane.b32.xlu0 %v261, 1
        %v404 = vpop.permute.xlu0 %403
        %405 = vrot.lane.b32.xlu0 %v263, 1
        %v406 = vpop.permute.xlu0 %405
        %407 = vrot.lane.b32.xlu0 %v265, 1
        %v408 = vpop.permute.xlu0 %407
        %409 = vrot.lane.b32.xlu0 %v260, 1
        %v410 = vpop.permute.xlu0 %409
        %411 = vrot.lane.b32.xlu0 %v262, 1
        %v412 = vpop.permute.xlu0 %411
        %413 = vrot.lane.b32.xlu0 %v264, 1
        %v414 = vpop.permute.xlu0 %413
        %415 = vrot.lane.b32.xlu0 %v266, 1
        %v416 = vpop.permute.xlu0 %415
        %vm417 = vcmp.lt.s32.totalorder %v284, 1
        %v418 = vsel %vm417, %v402, %v410
        %v419 = vsel %vm417, %v404, %v412
        %v420 = vsel %vm417, %v406, %v414
        %v421 = vsel %vm417, %v408, %v416
        %v422 = vsel %vm417, %v410, %v402
        %v423 = vsel %vm417, %v412, %v404
        %v424 = vsel %vm417, %v414, %v406
        %v425 = vsel %vm417, %v416, %v408
        %v427 = vlaneseq
        %v428 = vshrl.u32 %v427, 7
        %v429 = vsub.s32 0, %v428
        %v430 = vrot.slane %v254, %v429
        %v431 = vlaneseq
        %v432 = vshrl.u32 %v431, 7
        %v433 = vsub.s32 1, %v432
        %v434 = vrot.slane %v254, %v433
        %v437 = vmul.f32 %v422, %v430
        %v438 = vmul.f32 %v418, %v434
        %v439 = vmul.f32 %v423, %v430
        %v440 = vmul.f32 %v419, %v434
        %v441 = vmul.f32 %v424, %v430
        %v442 = vmul.f32 %v420, %v434
        %v443 = vmul.f32 %v425, %v430
        %v444 = vmul.f32 %v421, %v434
        %445 = vrot.lane.b32.xlu0 %v259, 127
        %v446 = vpop.permute.xlu0 %445
        %447 = vrot.lane.b32.xlu0 %v261, 127
        %v448 = vpop.permute.xlu0 %447
        %449 = vrot.lane.b32.xlu0 %v263, 127
        %v450 = vpop.permute.xlu0 %449
        %451 = vrot.lane.b32.xlu0 %v265, 127
        %v452 = vpop.permute.xlu0 %451
        %453 = vrot.lane.b32.xlu0 %v260, 127
        %v454 = vpop.permute.xlu0 %453
        %455 = vrot.lane.b32.xlu0 %v262, 127
        %v456 = vpop.permute.xlu0 %455
        %457 = vrot.lane.b32.xlu0 %v264, 127
        %v458 = vpop.permute.xlu0 %457
        %459 = vrot.lane.b32.xlu0 %v266, 127
        %v460 = vpop.permute.xlu0 %459
        %vm461 = vcmp.lt.s32.totalorder %v284, 127
        %v462 = vsel %vm461, %v446, %v454
        %v463 = vsel %vm461, %v448, %v456
        %v464 = vsel %vm461, %v450, %v458
        %v465 = vsel %vm461, %v452, %v460
        %v466 = vsel %vm461, %v454, %v446
        %v467 = vsel %vm461, %v456, %v448
        %v468 = vsel %vm461, %v458, %v450
        %v469 = vsel %vm461, %v460, %v452
        %v471 = vlaneseq
        %v472 = vshrl.u32 %v471, 7
        %v473 = vsub.s32 0, %v472
        %v474 = vrot.slane %v255, %v473
        %v475 = vlaneseq
        %v476 = vshrl.u32 %v475, 7
        %v477 = vsub.s32 1, %v476
        %v478 = vrot.slane %v255, %v477
        %v481 = vmul.f32 %v462, %v474
        %v482 = vmul.f32 %v466, %v478
        %v483 = vmul.f32 %v463, %v474
        %v484 = vmul.f32 %v467, %v478
        %v485 = vmul.f32 %v464, %v474
        %v486 = vmul.f32 %v468, %v478
        %v487 = vmul.f32 %v465, %v474
        %v488 = vmul.f32 %v469, %v478
        %489 = vrot.lane.b32.xlu0 %v259, 113
        %v490 = vpop.permute.xlu0 %489
        %491 = vrot.lane.b32.xlu0 %v261, 113
        %v492 = vpop.permute.xlu0 %491
        %493 = vrot.lane.b32.xlu0 %v263, 113
        %v494 = vpop.permute.xlu0 %493
        %495 = vrot.lane.b32.xlu0 %v265, 113
        %v496 = vpop.permute.xlu0 %495
        %497 = vrot.lane.b32.xlu0 %v260, 113
        %v498 = vpop.permute.xlu0 %497
        %499 = vrot.lane.b32.xlu0 %v262, 113
        %v500 = vpop.permute.xlu0 %499
        %501 = vrot.lane.b32.xlu0 %v264, 113
        %v502 = vpop.permute.xlu0 %501
        %503 = vrot.lane.b32.xlu0 %v266, 113
        %v504 = vpop.permute.xlu0 %503
        %vm505 = vcmp.lt.s32.totalorder %v284, 113
        %v506 = vsel %vm505, %v490, %v498
        %v507 = vsel %vm505, %v492, %v500
        %v508 = vsel %vm505, %v494, %v502
        %v509 = vsel %vm505, %v496, %v504
        %v510 = vsel %vm505, %v498, %v490
        %v511 = vsel %vm505, %v500, %v492
        %v512 = vsel %vm505, %v502, %v494
        %v513 = vsel %vm505, %v504, %v496
        %v515 = vlaneseq
        %v516 = vshrl.u32 %v515, 7
        %v517 = vsub.s32 0, %v516
        %v518 = vrot.slane %v256, %v517
        %v519 = vlaneseq
        %v520 = vshrl.u32 %v519, 7
        %v521 = vsub.s32 1, %v520
        %v522 = vrot.slane %v256, %v521
        %v525 = vmul.f32 %v506, %v518
        %v526 = vmul.f32 %v510, %v522
        %v527 = vmul.f32 %v507, %v518
        %v528 = vmul.f32 %v511, %v522
        %v529 = vmul.f32 %v508, %v518
        %v530 = vmul.f32 %v512, %v522
        %v531 = vmul.f32 %v509, %v518
        %v532 = vmul.f32 %v513, %v522
        %533 = vrot.lane.b32.xlu0 %v259, 112
        %v534 = vpop.permute.xlu0 %533
        %535 = vrot.lane.b32.xlu0 %v261, 112
        %v536 = vpop.permute.xlu0 %535
        %537 = vrot.lane.b32.xlu0 %v263, 112
        %v538 = vpop.permute.xlu0 %537
        %539 = vrot.lane.b32.xlu0 %v265, 112
        %v540 = vpop.permute.xlu0 %539
        %541 = vrot.lane.b32.xlu0 %v260, 112
        %v542 = vpop.permute.xlu0 %541
        %543 = vrot.lane.b32.xlu0 %v262, 112
        %v544 = vpop.permute.xlu0 %543
        %545 = vrot.lane.b32.xlu0 %v264, 112
        %v546 = vpop.permute.xlu0 %545
        %547 = vrot.lane.b32.xlu0 %v266, 112
        %v548 = vpop.permute.xlu0 %547
        %vm549 = vcmp.lt.s32.totalorder %v284, 112
        %v550 = vsel %vm549, %v534, %v542
        %v551 = vsel %vm549, %v536, %v544
        %v552 = vsel %vm549, %v538, %v546
        %v553 = vsel %vm549, %v540, %v548
        %v554 = vsel %vm549, %v542, %v534
        %v555 = vsel %vm549, %v544, %v536
        %v556 = vsel %vm549, %v546, %v538
        %v557 = vsel %vm549, %v548, %v540
        %v559 = vlaneseq
        %v560 = vshrl.u32 %v559, 7
        %v561 = vsub.s32 0, %v560
        %v562 = vrot.slane %v257, %v561
        %v563 = vlaneseq
        %v564 = vshrl.u32 %v563, 7
        %v565 = vsub.s32 1, %v564
        %v566 = vrot.slane %v257, %v565
        %v569 = vmul.f32 %v550, %v562
        %v570 = vmul.f32 %v554, %v566
        %v571 = vmul.f32 %v551, %v562
        %v572 = vmul.f32 %v555, %v566
        %v573 = vmul.f32 %v552, %v562
        %v574 = vmul.f32 %v556, %v566
        %v575 = vmul.f32 %v553, %v562
        %v576 = vmul.f32 %v557, %v566
        %577 = vrot.lane.b32.xlu0 %v259, 111
        %v578 = vpop.permute.xlu0 %577
        %579 = vrot.lane.b32.xlu0 %v261, 111
        %v580 = vpop.permute.xlu0 %579
        %581 = vrot.lane.b32.xlu0 %v263, 111
        %v582 = vpop.permute.xlu0 %581
        %583 = vrot.lane.b32.xlu0 %v265, 111
        %v584 = vpop.permute.xlu0 %583
        %585 = vrot.lane.b32.xlu0 %v260, 111
        %v586 = vpop.permute.xlu0 %585
        %587 = vrot.lane.b32.xlu0 %v262, 111
        %v588 = vpop.permute.xlu0 %587
        %589 = vrot.lane.b32.xlu0 %v264, 111
        %v590 = vpop.permute.xlu0 %589
        %591 = vrot.lane.b32.xlu0 %v266, 111
        %v592 = vpop.permute.xlu0 %591
        %vm593 = vcmp.lt.s32.totalorder %v284, 111
        %v594 = vsel %vm593, %v578, %v586
        %v595 = vsel %vm593, %v580, %v588
        %v596 = vsel %vm593, %v582, %v590
        %v597 = vsel %vm593, %v584, %v592
        %v598 = vsel %vm593, %v586, %v578
        %v599 = vsel %vm593, %v588, %v580
        %v600 = vsel %vm593, %v590, %v582
        %v601 = vsel %vm593, %v592, %v584
        %v603 = vlaneseq
        %v604 = vshrl.u32 %v603, 7
        %v605 = vsub.s32 0, %v604
        %v606 = vrot.slane %v258, %v605
        %v607 = vlaneseq
        %v608 = vshrl.u32 %v607, 7
        %v609 = vsub.s32 1, %v608
        %v610 = vrot.slane %v258, %v609
        %v613 = vmul.f32 %v594, %v606
        %v614 = vmul.f32 %v598, %v610
        %v615 = vmul.f32 %v595, %v606
        %v616 = vmul.f32 %v599, %v610
        %v617 = vmul.f32 %v596, %v606
        %v618 = vmul.f32 %v600, %v610
        %v619 = vmul.f32 %v597, %v606
        %v620 = vmul.f32 %v601, %v610
        %vm621 = vcmask 261120
        %v623 = vsel %vm621, %v243, 0
        %v626 = vsel %vm621, %v246, 0
        %628 = vmatprep.subr.mxu0 %v306
        %629 = vmatpush1.msra.mxu0 %v305
        %630 = vmatprep.subr.mxu0 %v308
        %631 = vmatpush1.msra.mxu0 %v307
        %632 = vmatprep.subr.mxu0 %v310
        %633 = vmatpush1.msra.mxu0 %v309
        %634 = vmatprep.subr.mxu0 %v312
        %635 = vmatpush1.msra.mxu0 %v311
        %636 = vmatprep.subr.mxu0 %v350
        %637 = vmatpush1.msra.mxu0 %v349
        %638 = vmatprep.subr.mxu0 %v352
        %639 = vmatpush1.msra.mxu0 %v351
        %640 = vmatprep.subr.mxu0 %v354
        %641 = vmatpush1.msra.mxu0 %v353
        %642 = vmatprep.subr.mxu0 %v356
        %643 = vmatpush1.msra.mxu0 %v355
        %644 = vmatprep.subr.mxu0 %v394
        %645 = vmatpush1.msra.mxu0 %v393
        %646 = vmatprep.subr.mxu0 %v396
        %647 = vmatpush1.msra.mxu0 %v395
        %648 = vmatprep.subr.mxu0 %v398
        %649 = vmatpush1.msra.mxu0 %v397
        %650 = vmatprep.subr.mxu0 %v400
        %651 = vmatpush1.msra.mxu0 %v399
        %652 = vmatprep.subr.mxu0 %v438
        %653 = vmatpush1.msra.mxu0 %v437
        %654 = vmatprep.subr.mxu0 %v440
        %655 = vmatpush1.msra.mxu0 %v439
        %656 = vmatprep.subr.mxu0 %v442
        %657 = vmatpush1.msra.mxu0 %v441
        %658 = vmatprep.subr.mxu0 %v444
        %659 = vmatpush1.msra.mxu0 %v443
        %660 = vmatprep.subr.mxu0 %v260
        %661 = vmatpush1.msra.mxu0 %v259
        %662 = vmatprep.subr.mxu0 %v262
        %663 = vmatpush1.msra.mxu0 %v261
        %664 = vmatprep.subr.mxu0 %v264
        %665 = vmatpush1.msra.mxu0 %v263
        %666 = vmatprep.subr.mxu0 %v266
        %667 = vmatpush1.msra.mxu0 %v265
        %668 = vmatprep.subr.mxu0 %v482
        %669 = vmatpush1.msra.mxu0 %v481
        %670 = vmatprep.subr.mxu0 %v484
        %671 = vmatpush1.msra.mxu0 %v483
        %672 = vmatprep.subr.mxu0 %v486
        %673 = vmatpush1.msra.mxu0 %v485
        %674 = vmatprep.subr.mxu0 %v488
        %675 = vmatpush1.msra.mxu0 %v487
        %676 = vmatprep.subr.mxu0 %v526
        %677 = vmatpush1.msra.mxu0 %v525
        %678 = vmatprep.subr.mxu0 %v528
        %679 = vmatpush1.msra.mxu0 %v527
        %680 = vmatprep.subr.mxu0 %v530
        %681 = vmatpush1.msra.mxu0 %v529
        %682 = vmatprep.subr.mxu0 %v532
        %683 = vmatpush1.msra.mxu0 %v531
        %684 = vmatprep.subr.mxu0 %v570
        %685 = vmatpush1.msra.mxu0 %v569
        %686 = vmatprep.subr.mxu0 %v572
        %687 = vmatpush1.msra.mxu0 %v571
        %688 = vmatprep.subr.mxu0 %v574
        %689 = vmatpush1.msra.mxu0 %v573
        %690 = vmatprep.subr.mxu0 %v576
        %691 = vmatpush1.msra.mxu0 %v575
        %692 = vmatprep.mubr.f32.mxu0 %v242
        %693 = vmatmul.mubr.f32.gmra.mrb[0].mxu0 %v241
        %v694 = vpop.f32.mrb[0].mxu0
        %v695 = vadd.f32 0.0, %v694
        %v696 = vpop.f32.mrb[0].mxu0
        %v697 = vadd.f32 0.0, %v696
        %698 = vmatprep.mubr.f32.mxu0 %v245
        %699 = vmatmul.mubr.f32.gmra.mrb[0].mxu0 %v244
        %v700 = vpop.f32.mrb[0].mxu0
        %v701 = vadd.f32 0.0, %v700
        %v702 = vpop.f32.mrb[0].mxu0
        %v703 = vadd.f32 0.0, %v702
        %704 = vdwg.mxu0
        %705 = vmatprep.subr.mxu0 %v614
        %706 = vmatpush1.msra.mxu0 %v613
        %707 = vmatprep.subr.mxu0 %v616
        %708 = vmatpush1.msra.mxu0 %v615
        %709 = vmatprep.subr.mxu0 %v618
        %710 = vmatpush1.msra.mxu0 %v617
        %711 = vmatprep.subr.mxu0 %v620
        %712 = vmatpush1.msra.mxu0 %v619
        %713 = vmatprep.subr.mxu0 0.0
        %714 = vmatpush1.msra.mxu0 0.0
        %715 = vmatprep.subr.mxu0 0.0
        %716 = vmatpush1.msra.mxu0 0.0
        %717 = vmatprep.subr.mxu0 0.0
        %718 = vmatpush1.msra.mxu0 0.0
        %719 = vmatprep.subr.mxu0 0.0
        %720 = vmatpush1.msra.mxu0 0.0
        %721 = vmatprep.subr.mxu0 0.0
        %722 = vmatpush1.msra.mxu0 0.0
        %723 = vmatprep.subr.mxu0 0.0
        %724 = vmatpush1.msra.mxu0 0.0
        %725 = vmatprep.subr.mxu0 0.0
        %726 = vmatpush1.msra.mxu0 0.0
        %727 = vmatprep.subr.mxu0 0.0
        %728 = vmatpush1.msra.mxu0 0.0
        %729 = vmatprep.subr.mxu0 0.0
        %730 = vmatpush1.msra.mxu0 0.0
        %731 = vmatprep.subr.mxu0 0.0
        %732 = vmatpush1.msra.mxu0 0.0
        %733 = vmatprep.subr.mxu0 0.0
        %734 = vmatpush1.msra.mxu0 0.0
        %735 = vmatprep.subr.mxu0 0.0
        %736 = vmatpush1.msra.mxu0 0.0
        %737 = vmatprep.subr.mxu0 0.0
        %738 = vmatpush1.msra.mxu0 0.0
        %739 = vmatprep.subr.mxu0 0.0
        %740 = vmatpush1.msra.mxu0 0.0
        %741 = vmatprep.subr.mxu0 0.0
        %742 = vmatpush1.msra.mxu0 0.0
        %743 = vmatprep.subr.mxu0 0.0
        %744 = vmatpush1.msra.mxu0 0.0
        %745 = vmatprep.subr.mxu0 0.0
        %746 = vmatpush1.msra.mxu0 0.0
        %747 = vmatprep.subr.mxu0 0.0
        %748 = vmatpush1.msra.mxu0 0.0
        %749 = vmatprep.subr.mxu0 0.0
        %750 = vmatpush1.msra.mxu0 0.0
        %751 = vmatprep.subr.mxu0 0.0
        %752 = vmatpush1.msra.mxu0 0.0
        %753 = vmatprep.subr.mxu0 0.0
        %754 = vmatpush1.msra.mxu0 0.0
        %755 = vmatprep.subr.mxu0 0.0
        %756 = vmatpush1.msra.mxu0 0.0
        %757 = vmatprep.subr.mxu0 0.0
        %758 = vmatpush1.msra.mxu0 0.0
        %759 = vmatprep.subr.mxu0 0.0
        %760 = vmatpush1.msra.mxu0 0.0
        %761 = vmatprep.subr.mxu0 0.0
        %762 = vmatpush1.msra.mxu0 0.0
        %763 = vmatprep.subr.mxu0 0.0
        %764 = vmatpush1.msra.mxu0 0.0
        %765 = vmatprep.subr.mxu0 0.0
        %766 = vmatpush1.msra.mxu0 0.0
        %767 = vmatprep.subr.mxu0 0.0
        %768 = vmatpush1.msra.mxu0 0.0
        %769 = vmatprep.mubr.f32.mxu0 0.0
        %770 = vmatmul.mubr.f32.gmra.mrb[0].mxu0 %v623
        %v771 = vpop.f32.mrb[0].mxu0
        %v772 = vadd.f32 %v695, %v771
        %v773 = vpop.f32.mrb[0].mxu0
        %v774 = vadd.f32 %v697, %v773
        %775 = vmatprep.mubr.f32.mxu0 0.0
        %776 = vmatmul.mubr.f32.gmra.mrb[0].mxu0 %v626
        %v777 = vpop.f32.mrb[0].mxu0
        %v778 = vadd.f32 %v701, %v777
        %v779 = vpop.f32.mrb[0].mxu0
        %v780 = vadd.f32 %v703, %v779
        %781 = vdwg.mxu0
        %v782 = vmax.f32 %v772, 0.0
        %v783 = vmax.f32 %v774, 0.0
        %v784 = vmax.f32 %v778, 0.0
        %v785 = vmax.f32 %v780, 0.0
        %vm786 = vcmask 130048
        %v788 = vsel %vm786, %v247, 0
        %v791 = vsel %vm786, %v248, 0
        %v794 = vsel %vm786, %v249, 0
        %v797 = vsel %vm786, %v250, 0
        %799 = vmatprep.subr.mxu0 %v783
        %800 = vmatpush1.msra.mxu0 %v782
        %801 = vmatprep.subr.mxu0 %v785
        %802 = vmatpush1.msra.mxu0 %v784
        %803 = vmatprep.subr.mxu0 0.0
        %804 = vmatpush1.msra.mxu0 0.0
        %805 = vmatprep.subr.mxu0 0.0
        %806 = vmatpush1.msra.mxu0 0.0
        %807 = vmatprep.subr.mxu0 0.0
        %808 = vmatpush1.msra.mxu0 0.0
        %809 = vmatprep.subr.mxu0 0.0
        %810 = vmatpush1.msra.mxu0 0.0
        %811 = vmatprep.subr.mxu0 0.0
        %812 = vmatpush1.msra.mxu0 0.0
        %813 = vmatprep.subr.mxu0 0.0
        %814 = vmatpush1.msra.mxu0 0.0
        %815 = vmatprep.subr.mxu0 0.0
        %816 = vmatpush1.msra.mxu0 0.0
        %817 = vmatprep.subr.mxu0 0.0
        %818 = vmatpush1.msra.mxu0 0.0
        %819 = vmatprep.subr.mxu0 0.0
        %820 = vmatpush1.msra.mxu0 0.0
        %821 = vmatprep.subr.mxu0 0.0
        %822 = vmatpush1.msra.mxu0 0.0
        %823 = vmatprep.subr.mxu0 0.0
        %824 = vmatpush1.msra.mxu0 0.0
        %825 = vmatprep.subr.mxu0 0.0
        %826 = vmatpush1.msra.mxu0 0.0
        %827 = vmatprep.subr.mxu0 0.0
        %828 = vmatpush1.msra.mxu0 0.0
        %829 = vmatprep.subr.mxu0 0.0
        %830 = vmatpush1.msra.mxu0 0.0
        %831 = vmatprep.subr.mxu0 0.0
        %832 = vmatpush1.msra.mxu0 0.0
        %833 = vmatprep.subr.mxu0 0.0
        %834 = vmatpush1.msra.mxu0 0.0
        %835 = vmatprep.subr.mxu0 0.0
        %836 = vmatpush1.msra.mxu0 0.0
        %837 = vmatprep.subr.mxu0 0.0
        %838 = vmatpush1.msra.mxu0 0.0
        %839 = vmatprep.subr.mxu0 0.0
        %840 = vmatpush1.msra.mxu0 0.0
        %841 = vmatprep.subr.mxu0 0.0
        %842 = vmatpush1.msra.mxu0 0.0
        %843 = vmatprep.subr.mxu0 0.0
        %844 = vmatpush1.msra.mxu0 0.0
        %845 = vmatprep.subr.mxu0 0.0
        %846 = vmatpush1.msra.mxu0 0.0
        %847 = vmatprep.subr.mxu0 0.0
        %848 = vmatpush1.msra.mxu0 0.0
        %849 = vmatprep.subr.mxu0 0.0
        %850 = vmatpush1.msra.mxu0 0.0
        %851 = vmatprep.subr.mxu0 0.0
        %852 = vmatpush1.msra.mxu0 0.0
        %853 = vmatprep.subr.mxu0 0.0
        %854 = vmatpush1.msra.mxu0 0.0
        %855 = vmatprep.subr.mxu0 0.0
        %856 = vmatpush1.msra.mxu0 0.0
        %857 = vmatprep.subr.mxu0 0.0
        %858 = vmatpush1.msra.mxu0 0.0
        %859 = vmatprep.subr.mxu0 0.0
        %860 = vmatpush1.msra.mxu0 0.0
        %861 = vmatprep.subr.mxu0 0.0
        %862 = vmatpush1.msra.mxu0 0.0
        %863 = vmatprep.mubr.f32.mxu0 0.0
        %864 = vmatmul.mubr.f32.gmra.mrb[0].mxu0 %v788
        %v865 = vpop.f32.mrb[0].mxu0
        %v866 = vadd.f32 0.0, %v865
        %v867 = vpop.f32.mrb[0].mxu0
        %v868 = vadd.f32 0.0, %v867
        %869 = vmatprep.mubr.f32.mxu0 0.0
        %870 = vmatmul.mubr.f32.gmra.mrb[0].mxu0 %v791
        %v871 = vpop.f32.mrb[0].mxu0
        %v872 = vadd.f32 0.0, %v871
        %v873 = vpop.f32.mrb[0].mxu0
        %v874 = vadd.f32 0.0, %v873
        %875 = vmatprep.mubr.f32.mxu0 0.0
        %876 = vmatmul.mubr.f32.gmra.mrb[0].mxu0 %v794
        %v877 = vpop.f32.mrb[0].mxu0
        %v878 = vadd.f32 0.0, %v877
        %v879 = vpop.f32.mrb[0].mxu0
        %v880 = vadd.f32 0.0, %v879
        %881 = vmatprep.mubr.f32.mxu0 0.0
        %882 = vmatmul.mubr.f32.gmra.mrb[0].mxu0 %v797
        %v883 = vpop.f32.mrb[0].mxu0
        %v884 = vadd.f32 0.0, %v883
        %v885 = vpop.f32.mrb[0].mxu0
        %v886 = vadd.f32 0.0, %v885
        %887 = vdwg.mxu0
        %v888 = vadd.f32 %v233, %v866
        %v889 = vadd.f32 %v234, %v868
        %v890 = vadd.f32 %v235, %v872
        %v891 = vadd.f32 %v236, %v874
        %v892 = vadd.f32 %v237, %v878
        %v893 = vadd.f32 %v238, %v880
        %v894 = vadd.f32 %v239, %v884
        %v895 = vadd.f32 %v240, %v886
        %v896 = vmax.f32 %v888, 0.0
        %v897 = vmax.f32 %v889, 0.0
        %v898 = vmax.f32 %v890, 0.0
        %v899 = vmax.f32 %v891, 0.0
        %v900 = vmax.f32 %v892, 0.0
        %v901 = vmax.f32 %v893, 0.0
        %v902 = vmax.f32 %v894, 0.0
        %v903 = vmax.f32 %v895, 0.0
        %904 = vrot.lane.b32.xlu0 %v896, 17
        %v905 = vpop.permute.xlu0 %904
        %906 = vrot.lane.b32.xlu0 %v898, 17
        %v907 = vpop.permute.xlu0 %906
        %908 = vrot.lane.b32.xlu0 %v900, 17
        %v909 = vpop.permute.xlu0 %908
        %910 = vrot.lane.b32.xlu0 %v902, 17
        %v911 = vpop.permute.xlu0 %910
        %912 = vrot.lane.b32.xlu0 %v897, 17
        %v913 = vpop.permute.xlu0 %912
        %914 = vrot.lane.b32.xlu0 %v899, 17
        %v915 = vpop.permute.xlu0 %914
        %916 = vrot.lane.b32.xlu0 %v901, 17
        %v917 = vpop.permute.xlu0 %916
        %918 = vrot.lane.b32.xlu0 %v903, 17
        %v919 = vpop.permute.xlu0 %918
        %v920 = vsel %vm285, %v905, %v913
        %v921 = vsel %vm285, %v907, %v915
        %v922 = vsel %vm285, %v909, %v917
        %v923 = vsel %vm285, %v911, %v919
        %v924 = vsel %vm285, %v913, %v905
        %v925 = vsel %vm285, %v915, %v907
        %v926 = vsel %vm285, %v917, %v909
        %v927 = vsel %vm285, %v919, %v911
        %v928 = vmul.f32 %v924, %v298
        %v929 = vmul.f32 %v920, %v302
        %v930 = vmul.f32 %v925, %v298
        %v931 = vmul.f32 %v921, %v302
        %v932 = vmul.f32 %v926, %v298
        %v933 = vmul.f32 %v922, %v302
        %v934 = vmul.f32 %v927, %v298
        %v935 = vmul.f32 %v923, %v302
        %936 = vrot.lane.b32.xlu0 %v896, 16
        %v937 = vpop.permute.xlu0 %936
        %938 = vrot.lane.b32.xlu0 %v898, 16
        %v939 = vpop.permute.xlu0 %938
        %940 = vrot.lane.b32.xlu0 %v900, 16
        %v941 = vpop.permute.xlu0 %940
        %942 = vrot.lane.b32.xlu0 %v902, 16
        %v943 = vpop.permute.xlu0 %942
        %944 = vrot.lane.b32.xlu0 %v897, 16
        %v945 = vpop.permute.xlu0 %944
        %946 = vrot.lane.b32.xlu0 %v899, 16
        %v947 = vpop.permute.xlu0 %946
        %948 = vrot.lane.b32.xlu0 %v901, 16
        %v949 = vpop.permute.xlu0 %948
        %950 = vrot.lane.b32.xlu0 %v903, 16
        %v951 = vpop.permute.xlu0 %950
        %v952 = vsel %vm329, %v937, %v945
        %v953 = vsel %vm329, %v939, %v947
        %v954 = vsel %vm329, %v941, %v949
        %v955 = vsel %vm329, %v943, %v951
        %v956 = vsel %vm329, %v945, %v937
        %v957 = vsel %vm329, %v947, %v939
        %v958 = vsel %vm329, %v949, %v941
        %v959 = vsel %vm329, %v951, %v943
        %v960 = vmul.f32 %v956, %v342
        %v961 = vmul.f32 %v952, %v346
        %v962 = vmul.f32 %v957, %v342
        %v963 = vmul.f32 %v953, %v346
        %v964 = vmul.f32 %v958, %v342
        %v965 = vmul.f32 %v954, %v346
        %v966 = vmul.f32 %v959, %v342
        %v967 = vmul.f32 %v955, %v346
        %968 = vrot.lane.b32.xlu0 %v896, 15
        %v969 = vpop.permute.xlu0 %968
        %970 = vrot.lane.b32.xlu0 %v898, 15
        %v971 = vpop.permute.xlu0 %970
        %972 = vrot.lane.b32.xlu0 %v900, 15
        %v973 = vpop.permute.xlu0 %972
        %974 = vrot.lane.b32.xlu0 %v902, 15
        %v975 = vpop.permute.xlu0 %974
        %976 = vrot.lane.b32.xlu0 %v897, 15
        %v977 = vpop.permute.xlu0 %976
        %978 = vrot.lane.b32.xlu0 %v899, 15
        %v979 = vpop.permute.xlu0 %978
        %980 = vrot.lane.b32.xlu0 %v901, 15
        %v981 = vpop.permute.xlu0 %980
        %982 = vrot.lane.b32.xlu0 %v903, 15
        %v983 = vpop.permute.xlu0 %982
        %v984 = vsel %vm373, %v969, %v977
        %v985 = vsel %vm373, %v971, %v979
        %v986 = vsel %vm373, %v973, %v981
        %v987 = vsel %vm373, %v975, %v983
        %v988 = vsel %vm373, %v977, %v969
        %v989 = vsel %vm373, %v979, %v971
        %v990 = vsel %vm373, %v981, %v973
        %v991 = vsel %vm373, %v983, %v975
        %v992 = vmul.f32 %v988, %v386
        %v993 = vmul.f32 %v984, %v390
        %v994 = vmul.f32 %v989, %v386
        %v995 = vmul.f32 %v985, %v390
        %v996 = vmul.f32 %v990, %v386
        %v997 = vmul.f32 %v986, %v390
        %v998 = vmul.f32 %v991, %v386
        %v999 = vmul.f32 %v987, %v390
        %1000 = vrot.lane.b32.xlu0 %v896, 1
        %v1001 = vpop.permute.xlu0 %1000
        %1002 = vrot.lane.b32.xlu0 %v898, 1
        %v1003 = vpop.permute.xlu0 %1002
        %1004 = vrot.lane.b32.xlu0 %v900, 1
        %v1005 = vpop.permute.xlu0 %1004
        %1006 = vrot.lane.b32.xlu0 %v902, 1
        %v1007 = vpop.permute.xlu0 %1006
        %1008 = vrot.lane.b32.xlu0 %v897, 1
        %v1009 = vpop.permute.xlu0 %1008
        %1010 = vrot.lane.b32.xlu0 %v899, 1
        %v1011 = vpop.permute.xlu0 %1010
        %1012 = vrot.lane.b32.xlu0 %v901, 1
        %v1013 = vpop.permute.xlu0 %1012
        %1014 = vrot.lane.b32.xlu0 %v903, 1
        %v1015 = vpop.permute.xlu0 %1014
        %v1016 = vsel %vm417, %v1001, %v1009
        %v1017 = vsel %vm417, %v1003, %v1011
        %v1018 = vsel %vm417, %v1005, %v1013
        %v1019 = vsel %vm417, %v1007, %v1015
        %v1020 = vsel %vm417, %v1009, %v1001
        %v1021 = vsel %vm417, %v1011, %v1003
        %v1022 = vsel %vm417, %v1013, %v1005
        %v1023 = vsel %vm417, %v1015, %v1007
        %v1024 = vmul.f32 %v1020, %v430
        %v1025 = vmul.f32 %v1016, %v434
        %v1026 = vmul.f32 %v1021, %v430
        %v1027 = vmul.f32 %v1017, %v434
        %v1028 = vmul.f32 %v1022, %v430
        %v1029 = vmul.f32 %v1018, %v434
        %v1030 = vmul.f32 %v1023, %v430
        %v1031 = vmul.f32 %v1019, %v434
        %1032 = vrot.lane.b32.xlu0 %v896, 127
        %v1033 = vpop.permute.xlu0 %1032
        %1034 = vrot.lane.b32.xlu0 %v898, 127
        %v1035 = vpop.permute.xlu0 %1034
        %1036 = vrot.lane.b32.xlu0 %v900, 127
        %v1037 = vpop.permute.xlu0 %1036
        %1038 = vrot.lane.b32.xlu0 %v902, 127
        %v1039 = vpop.permute.xlu0 %1038
        %1040 = vrot.lane.b32.xlu0 %v897, 127
        %v1041 = vpop.permute.xlu0 %1040
        %1042 = vrot.lane.b32.xlu0 %v899, 127
        %v1043 = vpop.permute.xlu0 %1042
        %1044 = vrot.lane.b32.xlu0 %v901, 127
        %v1045 = vpop.permute.xlu0 %1044
        %1046 = vrot.lane.b32.xlu0 %v903, 127
        %v1047 = vpop.permute.xlu0 %1046
        %v1048 = vsel %vm461, %v1033, %v1041
        %v1049 = vsel %vm461, %v1035, %v1043
        %v1050 = vsel %vm461, %v1037, %v1045
        %v1051 = vsel %vm461, %v1039, %v1047
        %v1052 = vsel %vm461, %v1041, %v1033
        %v1053 = vsel %vm461, %v1043, %v1035
        %v1054 = vsel %vm461, %v1045, %v1037
        %v1055 = vsel %vm461, %v1047, %v1039
        %v1056 = vmul.f32 %v1048, %v474
        %v1057 = vmul.f32 %v1052, %v478
        %v1058 = vmul.f32 %v1049, %v474
        %v1059 = vmul.f32 %v1053, %v478
        %v1060 = vmul.f32 %v1050, %v474
        %v1061 = vmul.f32 %v1054, %v478
        %v1062 = vmul.f32 %v1051, %v474
        %v1063 = vmul.f32 %v1055, %v478
        %1064 = vrot.lane.b32.xlu0 %v896, 113
        %v1065 = vpop.permute.xlu0 %1064
        %1066 = vrot.lane.b32.xlu0 %v898, 113
        %v1067 = vpop.permute.xlu0 %1066
        %1068 = vrot.lane.b32.xlu0 %v900, 113
        %v1069 = vpop.permute.xlu0 %1068
        %1070 = vrot.lane.b32.xlu0 %v902, 113
        %v1071 = vpop.permute.xlu0 %1070
        %1072 = vrot.lane.b32.xlu0 %v897, 113
        %v1073 = vpop.permute.xlu0 %1072
        %1074 = vrot.lane.b32.xlu0 %v899, 113
        %v1075 = vpop.permute.xlu0 %1074
        %1076 = vrot.lane.b32.xlu0 %v901, 113
        %v1077 = vpop.permute.xlu0 %1076
        %1078 = vrot.lane.b32.xlu0 %v903, 113
        %v1079 = vpop.permute.xlu0 %1078
        %v1080 = vsel %vm505, %v1065, %v1073
        %v1081 = vsel %vm505, %v1067, %v1075
        %v1082 = vsel %vm505, %v1069, %v1077
        %v1083 = vsel %vm505, %v1071, %v1079
        %v1084 = vsel %vm505, %v1073, %v1065
        %v1085 = vsel %vm505, %v1075, %v1067
        %v1086 = vsel %vm505, %v1077, %v1069
        %v1087 = vsel %vm505, %v1079, %v1071
        %v1088 = vmul.f32 %v1080, %v518
        %v1089 = vmul.f32 %v1084, %v522
        %v1090 = vmul.f32 %v1081, %v518
        %v1091 = vmul.f32 %v1085, %v522
        %v1092 = vmul.f32 %v1082, %v518
        %v1093 = vmul.f32 %v1086, %v522
        %v1094 = vmul.f32 %v1083, %v518
        %v1095 = vmul.f32 %v1087, %v522
        %1096 = vrot.lane.b32.xlu0 %v896, 112
        %v1097 = vpop.permute.xlu0 %1096
        %1098 = vrot.lane.b32.xlu0 %v898, 112
        %v1099 = vpop.permute.xlu0 %1098
        %1100 = vrot.lane.b32.xlu0 %v900, 112
        %v1101 = vpop.permute.xlu0 %1100
        %1102 = vrot.lane.b32.xlu0 %v902, 112
        %v1103 = vpop.permute.xlu0 %1102
        %1104 = vrot.lane.b32.xlu0 %v897, 112
        %v1105 = vpop.permute.xlu0 %1104
        %1106 = vrot.lane.b32.xlu0 %v899, 112
        %v1107 = vpop.permute.xlu0 %1106
        %1108 = vrot.lane.b32.xlu0 %v901, 112
        %v1109 = vpop.permute.xlu0 %1108
        %1110 = vrot.lane.b32.xlu0 %v903, 112
        %v1111 = vpop.permute.xlu0 %1110
        %v1112 = vsel %vm549, %v1097, %v1105
        %v1113 = vsel %vm549, %v1099, %v1107
        %v1114 = vsel %vm549, %v1101, %v1109
        %v1115 = vsel %vm549, %v1103, %v1111
        %v1116 = vsel %vm549, %v1105, %v1097
        %v1117 = vsel %vm549, %v1107, %v1099
        %v1118 = vsel %vm549, %v1109, %v1101
        %v1119 = vsel %vm549, %v1111, %v1103
        %v1120 = vmul.f32 %v1112, %v562
        %v1121 = vmul.f32 %v1116, %v566
        %v1122 = vmul.f32 %v1113, %v562
        %v1123 = vmul.f32 %v1117, %v566
        %v1124 = vmul.f32 %v1114, %v562
        %v1125 = vmul.f32 %v1118, %v566
        %v1126 = vmul.f32 %v1115, %v562
        %v1127 = vmul.f32 %v1119, %v566
        %1128 = vrot.lane.b32.xlu0 %v896, 111
        %v1129 = vpop.permute.xlu0 %1128
        %1130 = vrot.lane.b32.xlu0 %v898, 111
        %v1131 = vpop.permute.xlu0 %1130
        %1132 = vrot.lane.b32.xlu0 %v900, 111
        %v1133 = vpop.permute.xlu0 %1132
        %1134 = vrot.lane.b32.xlu0 %v902, 111
        %v1135 = vpop.permute.xlu0 %1134
        %1136 = vrot.lane.b32.xlu0 %v897, 111
        %v1137 = vpop.permute.xlu0 %1136
        %1138 = vrot.lane.b32.xlu0 %v899, 111
        %v1139 = vpop.permute.xlu0 %1138
        %1140 = vrot.lane.b32.xlu0 %v901, 111
        %v1141 = vpop.permute.xlu0 %1140
        %1142 = vrot.lane.b32.xlu0 %v903, 111
        %v1143 = vpop.permute.xlu0 %1142
        %v1144 = vsel %vm593, %v1129, %v1137
        %v1145 = vsel %vm593, %v1131, %v1139
        %v1146 = vsel %vm593, %v1133, %v1141
        %v1147 = vsel %vm593, %v1135, %v1143
        %v1148 = vsel %vm593, %v1137, %v1129
        %v1149 = vsel %vm593, %v1139, %v1131
        %v1150 = vsel %vm593, %v1141, %v1133
        %v1151 = vsel %vm593, %v1143, %v1135
        %v1152 = vmul.f32 %v1144, %v606
        %v1153 = vmul.f32 %v1148, %v610
        %v1154 = vmul.f32 %v1145, %v606
        %v1155 = vmul.f32 %v1149, %v610
        %v1156 = vmul.f32 %v1146, %v606
        %v1157 = vmul.f32 %v1150, %v610
        %v1158 = vmul.f32 %v1147, %v606
        %v1159 = vmul.f32 %v1151, %v610
        %1160 = vmatprep.subr.mxu0 %v929
        %1161 = vmatpush1.msra.mxu0 %v928
        %1162 = vmatprep.subr.mxu0 %v931
        %1163 = vmatpush1.msra.mxu0 %v930
        %1164 = vmatprep.subr.mxu0 %v933
        %1165 = vmatpush1.msra.mxu0 %v932
        %1166 = vmatprep.subr.mxu0 %v935
        %1167 = vmatpush1.msra.mxu0 %v934
        %1168 = vmatprep.subr.mxu0 %v961
        %1169 = vmatpush1.msra.mxu0 %v960
        %1170 = vmatprep.subr.mxu0 %v963
        %1171 = vmatpush1.msra.mxu0 %v962
        %1172 = vmatprep.subr.mxu0 %v965
        %1173 = vmatpush1.msra.mxu0 %v964
        %1174 = vmatprep.subr.mxu0 %v967
        %1175 = vmatpush1.msra.mxu0 %v966
        %1176 = vmatprep.subr.mxu0 %v993
        %1177 = vmatpush1.msra.mxu0 %v992
        %1178 = vmatprep.subr.mxu0 %v995
        %1179 = vmatpush1.msra.mxu0 %v994
        %1180 = vmatprep.subr.mxu0 %v997
        %1181 = vmatpush1.msra.mxu0 %v996
        %1182 = vmatprep.subr.mxu0 %v999
        %1183 = vmatpush1.msra.mxu0 %v998
        %1184 = vmatprep.subr.mxu0 %v1025
        %1185 = vmatpush1.msra.mxu0 %v1024
        %1186 = vmatprep.subr.mxu0 %v1027
        %1187 = vmatpush1.msra.mxu0 %v1026
        %1188 = vmatprep.subr.mxu0 %v1029
        %1189 = vmatpush1.msra.mxu0 %v1028
        %1190 = vmatprep.subr.mxu0 %v1031
        %1191 = vmatpush1.msra.mxu0 %v1030
        %1192 = vmatprep.subr.mxu0 %v897
        %1193 = vmatpush1.msra.mxu0 %v896
        %1194 = vmatprep.subr.mxu0 %v899
        %1195 = vmatpush1.msra.mxu0 %v898
        %1196 = vmatprep.subr.mxu0 %v901
        %1197 = vmatpush1.msra.mxu0 %v900
        %1198 = vmatprep.subr.mxu0 %v903
        %1199 = vmatpush1.msra.mxu0 %v902
        %1200 = vmatprep.subr.mxu0 %v1057
        %1201 = vmatpush1.msra.mxu0 %v1056
        %1202 = vmatprep.subr.mxu0 %v1059
        %1203 = vmatpush1.msra.mxu0 %v1058
        %1204 = vmatprep.subr.mxu0 %v1061
        %1205 = vmatpush1.msra.mxu0 %v1060
        %1206 = vmatprep.subr.mxu0 %v1063
        %1207 = vmatpush1.msra.mxu0 %v1062
        %1208 = vmatprep.subr.mxu0 %v1089
        %1209 = vmatpush1.msra.mxu0 %v1088
        %1210 = vmatprep.subr.mxu0 %v1091
        %1211 = vmatpush1.msra.mxu0 %v1090
        %1212 = vmatprep.subr.mxu0 %v1093
        %1213 = vmatpush1.msra.mxu0 %v1092
        %1214 = vmatprep.subr.mxu0 %v1095
        %1215 = vmatpush1.msra.mxu0 %v1094
        %1216 = vmatprep.subr.mxu0 %v1121
        %1217 = vmatpush1.msra.mxu0 %v1120
        %1218 = vmatprep.subr.mxu0 %v1123
        %1219 = vmatpush1.msra.mxu0 %v1122
        %1220 = vmatprep.subr.mxu0 %v1125
        %1221 = vmatpush1.msra.mxu0 %v1124
        %1222 = vmatprep.subr.mxu0 %v1127
        %1223 = vmatpush1.msra.mxu0 %v1126
        %1224 = vmatprep.mubr.f32.mxu0 %v242
        %1225 = vmatmul.mubr.f32.gmra.mrb[0].mxu0 %v241
        %v1226 = vpop.f32.mrb[0].mxu0
        %v1227 = vadd.f32 0.0, %v1226
        %v1228 = vpop.f32.mrb[0].mxu0
        %v1229 = vadd.f32 0.0, %v1228
        %1230 = vmatprep.mubr.f32.mxu0 %v245
        %1231 = vmatmul.mubr.f32.gmra.mrb[0].mxu0 %v244
        %v1232 = vpop.f32.mrb[0].mxu0
        %v1233 = vadd.f32 0.0, %v1232
        %v1234 = vpop.f32.mrb[0].mxu0
        %v1235 = vadd.f32 0.0, %v1234
        %1236 = vdwg.mxu0
        %1237 = vmatprep.subr.mxu0 %v1153
        %1238 = vmatpush1.msra.mxu0 %v1152
        %1239 = vmatprep.subr.mxu0 %v1155
        %1240 = vmatpush1.msra.mxu0 %v1154
        %1241 = vmatprep.subr.mxu0 %v1157
        %1242 = vmatpush1.msra.mxu0 %v1156
        %1243 = vmatprep.subr.mxu0 %v1159
        %1244 = vmatpush1.msra.mxu0 %v1158
        %1245 = vmatprep.subr.mxu0 0.0
        %1246 = vmatpush1.msra.mxu0 0.0
        %1247 = vmatprep.subr.mxu0 0.0
        %1248 = vmatpush1.msra.mxu0 0.0
        %1249 = vmatprep.subr.mxu0 0.0
        %1250 = vmatpush1.msra.mxu0 0.0
        %1251 = vmatprep.subr.mxu0 0.0
        %1252 = vmatpush1.msra.mxu0 0.0
        %1253 = vmatprep.subr.mxu0 0.0
        %1254 = vmatpush1.msra.mxu0 0.0
        %1255 = vmatprep.subr.mxu0 0.0
        %1256 = vmatpush1.msra.mxu0 0.0
        %1257 = vmatprep.subr.mxu0 0.0
        %1258 = vmatpush1.msra.mxu0 0.0
        %1259 = vmatprep.subr.mxu0 0.0
        %1260 = vmatpush1.msra.mxu0 0.0
        %1261 = vmatprep.subr.mxu0 0.0
        %1262 = vmatpush1.msra.mxu0 0.0
        %1263 = vmatprep.subr.mxu0 0.0
        %1264 = vmatpush1.msra.mxu0 0.0
        %1265 = vmatprep.subr.mxu0 0.0
        %1266 = vmatpush1.msra.mxu0 0.0
        %1267 = vmatprep.subr.mxu0 0.0
        %1268 = vmatpush1.msra.mxu0 0.0
        %1269 = vmatprep.subr.mxu0 0.0
        %1270 = vmatpush1.msra.mxu0 0.0
        %1271 = vmatprep.subr.mxu0 0.0
        %1272 = vmatpush1.msra.mxu0 0.0
        %1273 = vmatprep.subr.mxu0 0.0
        %1274 = vmatpush1.msra.mxu0 0.0
        %1275 = vmatprep.subr.mxu0 0.0
        %1276 = vmatpush1.msra.mxu0 0.0
        %1277 = vmatprep.subr.mxu0 0.0
        %1278 = vmatpush1.msra.mxu0 0.0
        %1279 = vmatprep.subr.mxu0 0.0
        %1280 = vmatpush1.msra.mxu0 0.0
        %1281 = vmatprep.subr.mxu0 0.0
        %1282 = vmatpush1.msra.mxu0 0.0
        %1283 = vmatprep.subr.mxu0 0.0
        %1284 = vmatpush1.msra.mxu0 0.0
        %1285 = vmatprep.subr.mxu0 0.0
        %1286 = vmatpush1.msra.mxu0 0.0
        %1287 = vmatprep.subr.mxu0 0.0
        %1288 = vmatpush1.msra.mxu0 0.0
        %1289 = vmatprep.subr.mxu0 0.0
        %1290 = vmatpush1.msra.mxu0 0.0
        %1291 = vmatprep.subr.mxu0 0.0
        %1292 = vmatpush1.msra.mxu0 0.0
        %1293 = vmatprep.subr.mxu0 0.0
        %1294 = vmatpush1.msra.mxu0 0.0
        %1295 = vmatprep.subr.mxu0 0.0
        %1296 = vmatpush1.msra.mxu0 0.0
        %1297 = vmatprep.subr.mxu0 0.0
        %1298 = vmatpush1.msra.mxu0 0.0
        %1299 = vmatprep.subr.mxu0 0.0
        %1300 = vmatpush1.msra.mxu0 0.0
        %1301 = vmatprep.mubr.f32.mxu0 0.0
        %1302 = vmatmul.mubr.f32.gmra.mrb[0].mxu0 %v623
        %v1303 = vpop.f32.mrb[0].mxu0
        %v1304 = vadd.f32 %v1227, %v1303
        %v1305 = vpop.f32.mrb[0].mxu0
        %v1306 = vadd.f32 %v1229, %v1305
        %1307 = vmatprep.mubr.f32.mxu0 0.0
        %1308 = vmatmul.mubr.f32.gmra.mrb[0].mxu0 %v626
        %v1309 = vpop.f32.mrb[0].mxu0
        %v1310 = vadd.f32 %v1233, %v1309
        %v1311 = vpop.f32.mrb[0].mxu0
        %v1312 = vadd.f32 %v1235, %v1311
        %1313 = vdwg.mxu0
        %v1314 = vmax.f32 %v1304, 0.0
        %v1315 = vmax.f32 %v1306, 0.0
        %v1316 = vmax.f32 %v1310, 0.0
        %v1317 = vmax.f32 %v1312, 0.0
        %1318 = vmatprep.subr.mxu0 %v1315
        %1319 = vmatpush1.msra.mxu0 %v1314
        %1320 = vmatprep.subr.mxu0 %v1317
        %1321 = vmatpush1.msra.mxu0 %v1316
        %1322 = vmatprep.subr.mxu0 0.0
        %1323 = vmatpush1.msra.mxu0 0.0
        %1324 = vmatprep.subr.mxu0 0.0
        %1325 = vmatpush1.msra.mxu0 0.0
        %1326 = vmatprep.subr.mxu0 0.0
        %1327 = vmatpush1.msra.mxu0 0.0
        %1328 = vmatprep.subr.mxu0 0.0
        %1329 = vmatpush1.msra.mxu0 0.0
        %1330 = vmatprep.subr.mxu0 0.0
        %1331 = vmatpush1.msra.mxu0 0.0
        %1332 = vmatprep.subr.mxu0 0.0
        %1333 = vmatpush1.msra.mxu0 0.0
        %1334 = vmatprep.subr.mxu0 0.0
        %1335 = vmatpush1.msra.mxu0 0.0
        %1336 = vmatprep.subr.mxu0 0.0
        %1337 = vmatpush1.msra.mxu0 0.0
        %1338 = vmatprep.subr.mxu0 0.0
        %1339 = vmatpush1.msra.mxu0 0.0
        %1340 = vmatprep.subr.mxu0 0.0
        %1341 = vmatpush1.msra.mxu0 0.0
        %1342 = vmatprep.subr.mxu0 0.0
        %1343 = vmatpush1.msra.mxu0 0.0
        %1344 = vmatprep.subr.mxu0 0.0
        %1345 = vmatpush1.msra.mxu0 0.0
        %1346 = vmatprep.subr.mxu0 0.0
        %1347 = vmatpush1.msra.mxu0 0.0
        %1348 = vmatprep.subr.mxu0 0.0
        %1349 = vmatpush1.msra.mxu0 0.0
        %1350 = vmatprep.subr.mxu0 0.0
        %1351 = vmatpush1.msra.mxu0 0.0
        %1352 = vmatprep.subr.mxu0 0.0
        %1353 = vmatpush1.msra.mxu0 0.0
        %1354 = vmatprep.subr.mxu0 0.0
        %1355 = vmatpush1.msra.mxu0 0.0
        %1356 = vmatprep.subr.mxu0 0.0
        %1357 = vmatpush1.msra.mxu0 0.0
        %1358 = vmatprep.subr.mxu0 0.0
        %1359 = vmatpush1.msra.mxu0 0.0
        %1360 = vmatprep.subr.mxu0 0.0
        %1361 = vmatpush1.msra.mxu0 0.0
        %1362 = vmatprep.subr.mxu0 0.0
        %1363 = vmatpush1.msra.mxu0 0.0
        %1364 = vmatprep.subr.mxu0 0.0
        %1365 = vmatpush1.msra.mxu0 0.0
        %1366 = vmatprep.subr.mxu0 0.0
        %1367 = vmatpush1.msra.mxu0 0.0
        %1368 = vmatprep.subr.mxu0 0.0
        %1369 = vmatpush1.msra.mxu0 0.0
        %1370 = vmatprep.subr.mxu0 0.0
        %1371 = vmatpush1.msra.mxu0 0.0
        %1372 = vmatprep.subr.mxu0 0.0
        %1373 = vmatpush1.msra.mxu0 0.0
        %1374 = vmatprep.subr.mxu0 0.0
        %1375 = vmatpush1.msra.mxu0 0.0
        %1376 = vmatprep.subr.mxu0 0.0
        %1377 = vmatpush1.msra.mxu0 0.0
        %1378 = vmatprep.subr.mxu0 0.0
        %1379 = vmatpush1.msra.mxu0 0.0
        %1380 = vmatprep.subr.mxu0 0.0
        %1381 = vmatpush1.msra.mxu0 0.0
        %1382 = vmatprep.mubr.f32.mxu0 0.0
        %1383 = vmatmul.mubr.f32.gmra.mrb[0].mxu0 %v788
        %v1384 = vpop.f32.mrb[0].mxu0
        %v1385 = vadd.f32 0.0, %v1384
        %v1386 = vpop.f32.mrb[0].mxu0
        %v1387 = vadd.f32 0.0, %v1386
        %1388 = vmatprep.mubr.f32.mxu0 0.0
        %1389 = vmatmul.mubr.f32.gmra.mrb[0].mxu0 %v791
        %v1390 = vpop.f32.mrb[0].mxu0
        %v1391 = vadd.f32 0.0, %v1390
        %v1392 = vpop.f32.mrb[0].mxu0
        %v1393 = vadd.f32 0.0, %v1392
        %1394 = vmatprep.mubr.f32.mxu0 0.0
        %1395 = vmatmul.mubr.f32.gmra.mrb[0].mxu0 %v794
        %v1396 = vpop.f32.mrb[0].mxu0
        %v1397 = vadd.f32 0.0, %v1396
        %v1398 = vpop.f32.mrb[0].mxu0
        %v1399 = vadd.f32 0.0, %v1398
        %1400 = vmatprep.mubr.f32.mxu0 0.0
        %1401 = vmatmul.mubr.f32.gmra.mrb[0].mxu0 %v797
        %v1402 = vpop.f32.mrb[0].mxu0
        %v1403 = vadd.f32 0.0, %v1402
        %v1404 = vpop.f32.mrb[0].mxu0
        %v1405 = vadd.f32 0.0, %v1404
        %1406 = vdwg.mxu0
        %v1407 = vadd.f32 %v888, %v1385
        %v1408 = vadd.f32 %v889, %v1387
        %v1409 = vadd.f32 %v890, %v1391
        %v1410 = vadd.f32 %v891, %v1393
        %v1411 = vadd.f32 %v892, %v1397
        %v1412 = vadd.f32 %v893, %v1399
        %v1413 = vadd.f32 %v894, %v1403
        %v1414 = vadd.f32 %v895, %v1405
        %v1415 = vmax.f32 %v1407, 0.0
        %v1416 = vmax.f32 %v1408, 0.0
        %v1417 = vmax.f32 %v1409, 0.0
        %v1418 = vmax.f32 %v1410, 0.0
        %v1419 = vmax.f32 %v1411, 0.0
        %v1420 = vmax.f32 %v1412, 0.0
        %v1421 = vmax.f32 %v1413, 0.0
        %v1422 = vmax.f32 %v1414, 0.0
        %1423 = vst [vmem:[%s230] sm:$0xff] %v1415
        %1424 = vst [vmem:[%s230 + $0x8] sm:$0xff] %v1416
        %1425 = vst [vmem:[%s230 + $0x10] sm:$0xff] %v1417
        %1426 = vst [vmem:[%s230 + $0x18] sm:$0xff] %v1418
        %1427 = vst [vmem:[%s230 + $0x20] sm:$0xff] %v1419
        %1428 = vst [vmem:[%s230 + $0x28] sm:$0xff] %v1420
        %1429 = vst [vmem:[%s230 + $0x30] sm:$0xff] %v1421
        %1430 = vst [vmem:[%s230 + $0x38] sm:$0xff] %v1422
        %s1431 = sand.u32 %s119, 1
        %s1432 = scalar_lea.sflag [#allocation4], %s1431
        %s1433 = sand.u32 %s119, 1
        %s1434 = smul.addr %s1433, 64
        %s1435 = scalar_lea.vmem [#allocation7], %s1434
        // Predicated region
        $region45: #{tpu_custom_call.1} parent=35 // pred_check
          %p1436 = pneg %p129
        $region46: #{tpu_custom_call.1} parent=35 // pred_check_branch
          %1438 = sbr.rel (%p1436) target = $region48
        $region47: #{tpu_custom_call.1} parent=35 // pred_region
          %s1439 = smul.u32 2, %s22
          %s1441 = ssub.s32 1024, 1024
          %1442 = vsyncadd %s1432, %s1441
          %s1443 = smul.addr %s1439, 128
          %s1444 = scalar_lea.hbm %s4, %s1443
          %s1445 = sshll.u32 %s1435, 4
          %s1446 = int_to_ptr.vmem [resolvable:$true] %s1445
          %1451 = dma.vmem_to_hbm [thread:$0]  %s1446, 1024, %s1444, %s1432, 256, 512, 16
        $region48: #{tpu_custom_call.1} parent=35 // pred_fallthru
          _
      $region36: #{tpu_custom_call.1} parent=5 // pred_fallthru
        _
      %p1452 = scmp.le.s32.totalorder 2, %s17
      // Predicated region
      $region49: #{tpu_custom_call.1} parent=5 // pred_check
        %p1453 = pneg %p1452
      $region50: #{tpu_custom_call.1} parent=5 // pred_check_branch
        %1455 = sbr.rel (%p1453) target = $region52
      $region51: #{tpu_custom_call.1} parent=5 // pred_region
        %s1456 = ssub.s32 %s17, 2
        // Predicated region
        $region53: #{tpu_custom_call.1} parent=51 // pred_check
          %p1457 = pneg %p135
        $region54: #{tpu_custom_call.1} parent=51 // pred_check_branch
          %1459 = sbr.rel (%p1457) target = $region56
        $region55: #{tpu_custom_call.1} parent=51 // pred_region
          %s1460 = sand.u32 %s120, 1
          %s1461 = scalar_lea.sflag [#allocation4], %s1460
          %s1462 = sand.u32 %s120, 1
          %s1463 = smul.addr %s1462, 64
          %s1464 = scalar_lea.vmem [#allocation7], %s1463
          %1465 = dma.done %s1461, 1024
        $region56: #{tpu_custom_call.1} parent=51 // pred_fallthru
          _
      $region52: #{tpu_custom_call.1} parent=5 // pred_fallthru
        _
    $region6: #{tpu_custom_call.1} parent=1 // loop_footer
      %s21 = sadd.s32 1, %s17
    $region7: #{tpu_custom_call.1} parent=1 // loop_footer_branch
      %16 = sbr.rel target = $region3
    $region8: #{tpu_custom_call.1} parent=1 // loop_exit
      _
    %1466 = vsyncpa [#allocation3], 1
    %s1467 = scalar_lea.sflag [#allocation3], 1
    %1468 = vsyncpa %s1467, 1
    %1469 = vsyncpa [#allocation6], 1
    %1470 = vsyncpa [#allocation4], 1
    %s1471 = scalar_lea.sflag [#allocation4], 1
    %1472 = vsyncpa %s1471, 1

</llo_original>
